<compile_context>
chip_gen: v7x
topology: tpu7x:2x2x1
jax: 0.10.0
libtpu: 0.0.40
codegen_flags: <defaults>
</compile_context>

<pallas_src>
import numpy as np
import jax
import jax.numpy as jnp
from jax.experimental import pallas as pl
from jax.experimental.pallas import tpu as pltpu


# ----------------------------- tiny tree structure -----------------------------
class _Leaf:
    def __init__(self, index):
        self.index = index
        self.size = 1


class _Branch:
    def __init__(self, index, l, r):
        self.index = index
        self.l = l
        self.r = r
        self.size = 1 + l.size + r.size


def build_tree(depth):
    """Complete binary tree with the same index assignment as Tree._init_tree."""
    def rec(i, d):
        if d == depth:
            return _Leaf(i)
        left = rec(i + 1, d + 1)
        right = rec(i + 1 + left.size, d + 1)
        return _Branch(i, left, right)

    root = rec(0, 0)
    branches, leaves, paths = [], [], []

    def collect(node, path):
        if isinstance(node, _Leaf):
            leaves.append(node)
            paths.append(list(path))
            return
        pos = len(branches)          # preorder position == out_map index
        branches.append(node)
        collect(node.l, path + [(pos, 0)])
        collect(node.r, path + [(pos, 1)])

    collect(root, [])
    return root, branches, leaves, paths


def routing_masks(num_protos, num_leaves, paths):
    """rr[p, l] = 1 if leaf l goes RIGHT at branch p, rl[p, l] = 1 if it goes LEFT."""
    rr = np.zeros((num_protos, num_leaves), np.float32)
    rl = np.zeros((num_protos, num_leaves), np.float32)
    for li, path in enumerate(paths):
        for (bpos, go_right) in path:
            if go_right:
                rr[bpos, li] = 1.0
            else:
                rl[bpos, li] = 1.0
    return jnp.asarray(rr), jnp.asarray(rl)


# ------------------------------- Pallas kernel ---------------------------------
def prototree_kernel(x_ref, xsq_ref, proto_ref, psq_ref, route_ref, leaf_ref,
                     out_ref, sim_ref):
    # x_ref:    (TB*Sp, D)   bf16  channel-last patches (TB samples stacked row-wise)
    # xsq_ref:  (TB*Sp, 1)   f32   exact |x|^2 per patch (padded spatial rows = 1e30)
    # proto_ref:(D, Pp)      bf16  -2 * prototype vectors, zero-padded to Pp lanes
    # psq_ref:  (1, Pp)      f32   exact squared prototype norms (padded cols = 0)
    # route_ref:(2*Pp, Lp)   f32   [right-routing ; left-routing] masks (pads = 0)
    # leaf_ref: (Lp, Cp)     f32   leaf class distributions (padded rows/cols = 0)
    # out_ref:  (TB, Cp)     f32   mixture output ('distributed' sampling strategy)
    # sim_ref:  (TB, Pp)     f32   exp(-min_distance) similarities
    TB = out_ref.shape[0]
    Sp = x_ref.shape[0] // TB
    Pp = sim_ref.shape[1]

    # 1) One fused MXU push for the whole batch block; -2 is folded into proto.
    xconv = jnp.dot(x_ref[...], proto_ref[...],
                    preferred_element_type=jnp.float32)              # (TB*Sp, Pp)
    # Squared L2 distances, clamped at 0 (sqrt is monotone -> deferred past the min).
    z = jnp.maximum(xsq_ref[...] + xconv + psq_ref[...], 0.0)        # (TB*Sp, Pp)
    # TODO(synk): for large TB*Sp, chunk the row axis with a running jnp.minimum
    # accumulator (fori_loop, unroll=True) instead of materializing all of z.

    # 2) Global min-pool per sample, entirely in registers.  Sp % 8 == 0, so the
    # reshape is layout-free and the min is a plain sublane reduction (no VMEM
    # scratch, no masked row stores, no vst->vld round-trip).
    min_z = jnp.min(z.reshape(TB, Sp, Pp), axis=1)                   # (TB, Pp)

    # 3) sqrt / exp hoisted after the min: O(TB*Pp) instead of O(TB*Sp*Pp).
    min_d = jnp.sqrt(min_z + 1e-14)                                  # >= 1e-7  (TB, Pp)
    sim = jnp.exp(-min_d)                                            # similarities

    # 4) Soft routing over the complete tree, in log-space on the MXU:
    #      pa(leaf) = exp( log(ps) @ rr + log(1-ps) @ rl )
    #    log(ps) == -min_d exactly (similarities = exp(-min_d), non-log path).
    #    log(1-ps) uses a numerically-stable log1mexp: a short series for small
    #    min_d avoids the 1 - exp(-d) cancellation (and any eps clamp / -inf)
    #    using only exp/log/where, which lower on every TPU generation.
    one_m = jnp.maximum(1.0 - sim, 1e-38)
    series = min_d * (1.0 - 0.5 * min_d + (min_d * min_d) * (1.0 / 6.0))
    log1m = jnp.log(jnp.where(min_d < 1e-2, series, one_m))          # (TB, Pp)

    # Fused routing matmul: one MXU push instead of two + add.  Lane-concat of two
    # 128-wide tiles is layout-free.
    route_lhs = jnp.concatenate([-min_d, log1m], axis=-1)            # (TB, 2*Pp)
    log_pa = jnp.dot(route_lhs, route_ref[...],
                     preferred_element_type=jnp.float32)             # (TB, Lp)
    pa = jnp.exp(log_pa)
    # Padded prototype rows / padded leaf columns of route_ref are zero and padded
    # leaf rows of leaf_ref are zero, so padded lanes contribute nothing to `out`.

    # Single full-tile, lane-dense stores.
    out_ref[...] = jnp.dot(pa, leaf_ref[...], preferred_element_type=jnp.float32)
    sim_ref[...] = sim


# --------------------------------- wrapper --------------------------------------
def _round_up(n, m):
    return ((n + m - 1) // m) * m


def _pad2d(a, rows, cols):
    r, c = a.shape
    return jnp.pad(a, ((0, rows - r), (0, cols - c)))


def prototree_forward(features_nchw, protos_pd, rr, rl, leaf_dist, *, block_batch=None):
    """features_nchw: (B, D, W, H) f32; protos_pd: (P, D) f32; leaf_dist: (L, C) f32."""
    B, D, Wf, Hf = features_nchw.shape
    S = Wf * Hf
    P = protos_pd.shape[0]
    L, C = leaf_dist.shape

    # Default: one grid step for small batches (per-step Pallas overhead ~0.35us
    # dominates tiny workloads).  For big backbones pick TB so the double-buffered
    # bf16 feature tile (2 * TB*Sp*D*2 B) plus constants fits the scoped VMEM limit
    # (v7x: 64 MiB physical / 32 MiB default) and keep >= 2 steps per TensorCore so
    # "parallel" megacore sharding and pipelining both engage.
    TB = B if block_batch is None else block_batch
    assert B % TB == 0, "batch must be divisible by the batch block"
    assert TB == B or TB % 8 == 0, "partial batch blocks must be a multiple of 8"

    # Lane-dense padding.  On v6e/v7x (2x256 MXU) keep P in (128,256] as one Pp=256
    # push and pad/keep D >= 128 when configurable; at toy size Pp=128 is native.
    Pp = _round_up(P, 128)
    Lp = _round_up(L, 128)
    Cp = _round_up(C, 128)
    Sp = _round_up(S, 8)            # keeps per-sample (Sp, Pp) slices (8,128)-aligned

    # NHWC patches; exact f32 |x|^2 computed here (not in-kernel from bf16 rows).
    x = jnp.transpose(features_nchw, (0, 2, 3, 1)).reshape(B, S, D)
    xsq = jnp.sum(x.astype(jnp.float32) ** 2, axis=-1, keepdims=True)     # (B, S, 1) f32
    if Sp != S:
        # Padded spatial rows: zero features + huge |x|^2 sentinel -> never win the min.
        x = jnp.pad(x, ((0, 0), (0, Sp - S), (0, 0)))
        xsq = jnp.pad(xsq, ((0, 0), (0, Sp - S), (0, 0)), constant_values=1e30)
    x = x.reshape(B * Sp, D).astype(jnp.bfloat16)                    # MXU operand
    xsq = xsq.reshape(B * Sp, 1)

    # Fold the -2 into the prototype operand (exact: x2 is a power of two); padded
    # prototype columns are zero vectors with |p|^2 = 0 (their sims are sliced off).
    proto_dp = _pad2d((-2.0 * protos_pd).T.astype(jnp.bfloat16), D, Pp)           # (D, Pp)
    psq = _pad2d(jnp.sum(protos_pd.astype(jnp.float32) ** 2, axis=1)[None, :], 1, Pp)
    # Invariant the kernel relies on (by construction of jnp.pad): padded prototype
    # ROWS and padded leaf COLUMNS of `route` are zero, padded leaf ROWS of `leaf_p`
    # are zero, so padded lanes never contribute to pa / out.
    route = jnp.concatenate([_pad2d(rr.astype(jnp.float32), Pp, Lp),
                             _pad2d(rl.astype(jnp.float32), Pp, Lp)], axis=0)     # (2*Pp, Lp)
    leaf_p = _pad2d(leaf_dist.astype(jnp.float32), Lp, Cp)                        # (Lp, Cp)

    grid = (B // TB,)
    # NOTE: for large trees, add `pipeline_mode=pl.Buffered(1)` to the four constant
    # BlockSpecs below to halve their VMEM footprint (negligible at this size).
    out_p, sim_p = pl.pallas_call(
        prototree_kernel,
        grid=grid,
        in_specs=[
            pl.BlockSpec((TB * Sp, D), lambda i: (i, 0)),   # features (per-block rows)
            pl.BlockSpec((TB * Sp, 1), lambda i: (i, 0)),   # exact f32 |x|^2
            pl.BlockSpec((D, Pp), lambda i: (0, 0)),        # -2 * prototypes (broadcast)
            pl.BlockSpec((1, Pp), lambda i: (0, 0)),        # |p|^2
            pl.BlockSpec((2 * Pp, Lp), lambda i: (0, 0)),   # stacked [rr ; rl] routing masks
            pl.BlockSpec((Lp, Cp), lambda i: (0, 0)),       # leaf distributions
        ],
        out_specs=[
            pl.BlockSpec((TB, Cp), lambda i: (i, 0)),
            pl.BlockSpec((TB, Pp), lambda i: (i, 0)),
        ],
        out_shape=[
            jax.ShapeDtypeStruct((B, Cp), jnp.float32),
            jax.ShapeDtypeStruct((B, Pp), jnp.float32),
        ],
        compiler_params=pltpu.CompilerParams(
            dimension_semantics=("parallel",),
            vmem_limit_bytes=32 << 20),
    )(x, xsq, proto_dp, psq, route, leaf_p)

    return out_p[:, :C], sim_p[:, :P]


# ----------------------------- plain-JAX glue / info ----------------------------
def compute_info(root, branches, sims):
    """Replicates info['pa_tensor'] / info['ps'] from Tree.forward (distributed)."""
    out_map = {id(b): i for i, b in enumerate(branches)}
    B = sims.shape[0]
    pa_tensor, ps_map = {}, {}

    def rec(node, pa):
        pa_tensor[node.index] = pa[:, None]
        if isinstance(node, _Branch):
            ps = sims[:, out_map[id(node)]]
            ps_map[node.index] = ps[:, None]
            rec(node.l, (1.0 - ps) * pa)
            rec(node.r, ps * pa)

    rec(root, jnp.ones(B, jnp.float32))
    return {"pa_tensor": pa_tensor, "ps": ps_map}


def reference_forward(features, protos_pd, root, branches, leaves, leaf_dist):
    """Independent pure-JAX (f32) reference mimicking the PyTorch recursion."""
    B, D, Wf, Hf = features.shape
    x = jnp.transpose(features, (0, 2, 3, 1)).reshape(B, Wf * Hf, D)
    diff = x[:, :, None, :] - protos_pd[None, None, :, :]           # (B, S, P, D)
    dist = jnp.sqrt(jnp.abs(jnp.sum(diff * diff, axis=-1)) + 1e-14)
    min_d = jnp.min(dist, axis=1)                                    # (B, P)
    sims = jnp.exp(-min_d)
    out_map = {id(b): i for i, b in enumerate(branches)}
    leaf_pos = {id(lf): i for i, lf in enumerate(leaves)}

    def rec(node):
        if isinstance(node, _Leaf):
            d = leaf_dist[leaf_pos[id(node)]]
            return jnp.broadcast_to(d[None, :], (B, d.shape[0]))
        ps = sims[:, out_map[id(node)]][:, None]
        return (1.0 - ps) * rec(node.l) + ps * rec(node.r)

    return rec(root), sims


# ------------------------------------ main --------------------------------------
if __name__ == "__main__":
    # Tree / prototype hyper-params (args): depth, num_classes, num_features, W1, H1
    depth = 3
    num_classes = 5
    num_features = 32
    W1 = H1 = 1                    # standard ProtoTree 1x1 prototypes
    B, Wf, Hf = 16, 4, 4           # small synthetic feature map (NCHW)

    root, branches, leaves, paths = build_tree(depth)
    P = len(branches)              # num_prototypes = num_branches = 2^depth - 1
    L = len(leaves)                # 2^depth

    key = jax.random.PRNGKey(0)
    k_feat, k_proto, k_leaf = jax.random.split(key, 3)

    # Deterministic synthetic parameters (torch.randn analogues).
    features = 0.1 * jax.random.normal(k_feat, (B, num_features, Wf, Hf), jnp.float32)
    protos = jax.random.normal(k_proto, (P, num_features, W1, H1), jnp.float32)
    protos_pd = protos.reshape(P, num_features)                      # (P, D)  (W1 = H1 = 1)

    # Leaf distributions: softmax(params - max(params)) per leaf (non-log path).
    leaf_params = jax.random.normal(k_leaf, (L, num_classes), jnp.float32)
    leaf_dist = jax.nn.softmax(
        leaf_params - jnp.max(leaf_params, axis=1, keepdims=True), axis=1)

    rr, rl = routing_masks(P, L, paths)

    # Single grid step for this batch (block_batch=None -> TB = B); pass e.g.
    # block_batch=8 to pipeline / megacore-shard bigger batches.
    out, sims = prototree_forward(features, protos_pd, rr, rl, leaf_dist)
    jax.block_until_ready((out, sims))

    # info dict (glue, plain JAX) — matches 'distributed' sampling strategy return.
    info = compute_info(root, branches, sims)
    # TODO(synk): 'sample_max' / 'greedy' sampling strategies use per-sample Python
    # control flow (argmax routing over node objects) and are left outside the kernel.

    # Correctness check against an independent pure-JAX f32 reference.  Tolerances
    # account for the bf16 MXU operands (features / prototypes rounded to bf16).
    out_ref, sims_ref = reference_forward(features, protos_pd, root, branches, leaves, leaf_dist)
    np.testing.assert_allclose(np.asarray(sims), np.asarray(sims_ref), rtol=2e-2, atol=1e-4)
    np.testing.assert_allclose(np.asarray(out), np.asarray(out_ref), rtol=2e-2, atol=2e-3)

    print("KERNEL_OK")
</pallas_src>

<mosaic_0001>
module attributes {stable_mosaic.version = 11 : i64} {
  func.func @prototree_kernel(%arg0: i32, %arg1: memref<256x32xbf16, #tpu.memory_space<vmem>>, %arg2: memref<256x1xf32, #tpu.memory_space<vmem>>, %arg3: memref<32x128xbf16, #tpu.memory_space<vmem>>, %arg4: memref<1x128xf32, #tpu.memory_space<vmem>>, %arg5: memref<256x128xf32, #tpu.memory_space<vmem>>, %arg6: memref<128x128xf32, #tpu.memory_space<vmem>>, %arg7: memref<16x128xf32, #tpu.memory_space<vmem>>, %arg8: memref<16x128xf32, #tpu.memory_space<vmem>>) attributes {dimension_semantics = [#tpu.dimension_semantics<parallel>], iteration_bounds = array<i64: 1>, scalar_prefetch = 0 : i64, scratch_operands = 0 : i64, tpu.core_type = #tpu.core_type<tc>, window_params = [{transform_indices = @transform_0, window_bounds = array<i64: 256, 32>}, {transform_indices = @transform_1, window_bounds = array<i64: 256, 1>}, {pipeline_mode = #tpu.pipeline_mode<synchronous>, transform_indices = @transform_2, window_bounds = array<i64: 32, 128>}, {pipeline_mode = #tpu.pipeline_mode<synchronous>, transform_indices = @transform_3, window_bounds = array<i64: 1, 128>}, {pipeline_mode = #tpu.pipeline_mode<synchronous>, transform_indices = @transform_4, window_bounds = array<i64: 256, 128>}, {pipeline_mode = #tpu.pipeline_mode<synchronous>, transform_indices = @transform_5, window_bounds = array<i64: 128, 128>}, {transform_indices = @transform_6, window_bounds = array<i64: 16, 128>}, {transform_indices = @transform_7, window_bounds = array<i64: 16, 128>}]} {
    %c0 = arith.constant 0 : index
    %c0_0 = arith.constant 0 : index
    %0 = vector.load %arg1[%c0, %c0_0] : memref<256x32xbf16, #tpu.memory_space<vmem>>, vector<256x32xbf16>
    %c0_1 = arith.constant 0 : index
    %c0_2 = arith.constant 0 : index
    %1 = vector.load %arg3[%c0_1, %c0_2] : memref<32x128xbf16, #tpu.memory_space<vmem>>, vector<32x128xbf16>
    %cst = arith.constant dense<0.000000e+00> : vector<256x128xf32>
    %2 = tpu.matmul %0, %1, %cst {dimension_numbers = #tpu.dot_dimension_numbers<[1], [0], [0], [1], [0, 0, 1, 1], [], []>} : vector<256x32xbf16>, vector<32x128xbf16>, vector<256x128xf32> -> vector<256x128xf32>
    %c0_3 = arith.constant 0 : index
    %c0_4 = arith.constant 0 : index
    %3 = vector.load %arg2[%c0_3, %c0_4] : memref<256x1xf32, #tpu.memory_space<vmem>>, vector<256x1xf32>
    %4 = vector.broadcast %3 : vector<256x1xf32> to vector<256x128xf32>
    %5 = arith.addf %4, %2 : vector<256x128xf32>
    %c0_5 = arith.constant 0 : index
    %c0_6 = arith.constant 0 : index
    %6 = vector.load %arg4[%c0_5, %c0_6] : memref<1x128xf32, #tpu.memory_space<vmem>>, vector<1x128xf32>
    %7 = vector.broadcast %6 : vector<1x128xf32> to vector<256x128xf32>
    %8 = arith.addf %5, %7 : vector<256x128xf32>
    %cst_7 = arith.constant 0.000000e+00 : f32
    %9 = vector.broadcast %cst_7 : f32 to vector<256x128xf32>
    %10 = arith.maximumf %8, %9 : vector<256x128xf32>
    %11 = vector.shape_cast %10 : vector<256x128xf32> to vector<16x16x128xf32>
    %cst_8 = arith.constant dense<0x7F800000> : vector<16x128xf32>
    %12 = vector.multi_reduction <minimumf>, %11, %cst_8 [1] : vector<16x16x128xf32> to vector<16x128xf32>
    %cst_9 = arith.constant 9.99999982E-15 : f32
    %13 = vector.broadcast %cst_9 : f32 to vector<16x128xf32>
    %14 = arith.addf %12, %13 : vector<16x128xf32>
    %15 = math.sqrt %14 : vector<16x128xf32>
    %cst_10 = arith.constant 0.000000e+00 : f32
    %16 = vector.broadcast %cst_10 : f32 to vector<16x128xf32>
    %17 = arith.subf %16, %15 : vector<16x128xf32>
    %18 = math.exp %17 : vector<16x128xf32>
    %cst_11 = arith.constant 1.000000e+00 : f32
    %19 = vector.broadcast %cst_11 : f32 to vector<16x128xf32>
    %20 = arith.subf %19, %18 : vector<16x128xf32>
    %cst_12 = arith.constant 9.99999935E-39 : f32
    %21 = vector.broadcast %cst_12 : f32 to vector<16x128xf32>
    %22 = arith.maximumf %20, %21 : vector<16x128xf32>
    %cst_13 = arith.constant 5.000000e-01 : f32
    %23 = vector.broadcast %cst_13 : f32 to vector<16x128xf32>
    %24 = arith.mulf %23, %15 : vector<16x128xf32>
    %cst_14 = arith.constant 1.000000e+00 : f32
    %25 = vector.broadcast %cst_14 : f32 to vector<16x128xf32>
    %26 = arith.subf %25, %24 : vector<16x128xf32>
    %27 = arith.mulf %15, %15 : vector<16x128xf32>
    %cst_15 = arith.constant 0.166666672 : f32
    %28 = vector.broadcast %cst_15 : f32 to vector<16x128xf32>
    %29 = arith.mulf %27, %28 : vector<16x128xf32>
    %30 = arith.addf %26, %29 : vector<16x128xf32>
    %31 = arith.mulf %15, %30 : vector<16x128xf32>
    %cst_16 = arith.constant 0.00999999977 : f32
    %32 = vector.broadcast %cst_16 : f32 to vector<16x128xf32>
    %33 = arith.cmpf olt, %15, %32 : vector<16x128xf32>
    %34 = arith.select %33, %31, %22 : vector<16x128xi1>, vector<16x128xf32>
    %35 = math.log %34 : vector<16x128xf32>
    %cst_17 = arith.constant 0.000000e+00 : f32
    %36 = vector.broadcast %cst_17 : f32 to vector<16x128xf32>
    %37 = arith.subf %36, %15 : vector<16x128xf32>
    %38 = tpu.concatenate %37, %35 in 1 : vector<16x128xf32>, vector<16x128xf32> -> vector<16x256xf32>
    %c0_18 = arith.constant 0 : index
    %c0_19 = arith.constant 0 : index
    %39 = vector.load %arg5[%c0_18, %c0_19] : memref<256x128xf32, #tpu.memory_space<vmem>>, vector<256x128xf32>
    %cst_20 = arith.constant dense<0.000000e+00> : vector<16x128xf32>
    %40 = tpu.matmul %38, %39, %cst_20 {dimension_numbers = #tpu.dot_dimension_numbers<[1], [0], [0], [1], [0, 0, 1, 1], [], []>} : vector<16x256xf32>, vector<256x128xf32>, vector<16x128xf32> -> vector<16x128xf32>
    %41 = math.exp %40 : vector<16x128xf32>
    %c0_21 = arith.constant 0 : index
    %c0_22 = arith.constant 0 : index
    %42 = vector.load %arg6[%c0_21, %c0_22] : memref<128x128xf32, #tpu.memory_space<vmem>>, vector<128x128xf32>
    %cst_23 = arith.constant dense<0.000000e+00> : vector<16x128xf32>
    %43 = tpu.matmul %41, %42, %cst_23 {dimension_numbers = #tpu.dot_dimension_numbers<[1], [0], [0], [1], [0, 0, 1, 1], [], []>} : vector<16x128xf32>, vector<128x128xf32>, vector<16x128xf32> -> vector<16x128xf32>
    %c0_24 = arith.constant 0 : index
    %c0_25 = arith.constant 0 : index
    %44 = vector.load %arg7[%c0_24, %c0_25] : memref<16x128xf32, #tpu.memory_space<vmem>>, vector<16x128xf32>
    tpu.vector_store %arg7[%c0_24, %c0_25], %43 {strides = array<i32>} : memref<16x128xf32, #tpu.memory_space<vmem>>, vector<16x128xf32>,
    %c0_26 = arith.constant 0 : index
    %c0_27 = arith.constant 0 : index
    %45 = vector.load %arg8[%c0_26, %c0_27] : memref<16x128xf32, #tpu.memory_space<vmem>>, vector<16x128xf32>
    tpu.vector_store %arg8[%c0_26, %c0_27], %18 {strides = array<i32>} : memref<16x128xf32, #tpu.memory_space<vmem>>, vector<16x128xf32>,
    return
  }
  func.func @transform_0(%arg0: i32) -> (i32, i32) {
    %c0_i32 = arith.constant 0 : i32
    %c0_i32_0 = arith.constant 0 : i32
    return %arg0, %c0_i32 : i32, i32
  }
  func.func @transform_1(%arg0: i32) -> (i32, i32) {
    %c0_i32 = arith.constant 0 : i32
    %c0_i32_0 = arith.constant 0 : i32
    return %arg0, %c0_i32 : i32, i32
  }
  func.func @transform_2(%arg0: i32) -> (i32, i32) {
    %c0_i32 = arith.constant 0 : i32
    %c0_i32_0 = arith.constant 0 : i32
    %c0_i32_1 = arith.constant 0 : i32
    return %c0_i32, %c0_i32_0 : i32, i32
  }
  func.func @transform_3(%arg0: i32) -> (i32, i32) {
    %c0_i32 = arith.constant 0 : i32
    %c0_i32_0 = arith.constant 0 : i32
    %c0_i32_1 = arith.constant 0 : i32
    return %c0_i32, %c0_i32_0 : i32, i32
  }
  func.func @transform_4(%arg0: i32) -> (i32, i32) {
    %c0_i32 = arith.constant 0 : i32
    %c0_i32_0 = arith.constant 0 : i32
    %c0_i32_1 = arith.constant 0 : i32
    return %c0_i32, %c0_i32_0 : i32, i32
  }
  func.func @transform_5(%arg0: i32) -> (i32, i32) {
    %c0_i32 = arith.constant 0 : i32
    %c0_i32_0 = arith.constant 0 : i32
    %c0_i32_1 = arith.constant 0 : i32
    return %c0_i32, %c0_i32_0 : i32, i32
  }
  func.func @transform_6(%arg0: i32) -> (i32, i32) {
    %c0_i32 = arith.constant 0 : i32
    %c0_i32_0 = arith.constant 0 : i32
    return %arg0, %c0_i32 : i32, i32
  }
  func.func @transform_7(%arg0: i32) -> (i32, i32) {
    %c0_i32 = arith.constant 0 : i32
    %c0_i32_0 = arith.constant 0 : i32
    return %arg0, %c0_i32 : i32, i32
  }
}

</mosaic_0001>

<llo_original>
// kernel: tpu_custom_call.1
$region0: #{tpu_custom_call.1}
  #allocation0 [shape = 'u32[]', space=smem, size = 0x4, offset = 0x4, fixed_abs, tag = 'smem constant byte address 0x4 - core index']
  #allocation1 [shape = 'u32[144,128]{1,0:T(1,128)}', space=vmem, size = 0x12000, scoped, tag = 'internal scratch']
  %s0 = inlined_call_operand.vmem [shape: bf16[256,32], index: 0, kind: input, shape index: {}]
  %s1 = inlined_call_operand.vmem [shape: f32[256,1], index: 1, kind: input, shape index: {}]
  %s2 = inlined_call_operand.vmem [shape: bf16[32,128], index: 2, kind: input, shape index: {}]
  %s3 = inlined_call_operand.vmem [shape: f32[1,128], index: 3, kind: input, shape index: {}]
  %s4 = inlined_call_operand.vmem [shape: f32[256,128], index: 4, kind: input, shape index: {}]
  %s5 = inlined_call_operand.vmem [shape: f32[128,128], index: 5, kind: input, shape index: {}]
  %s6 = inlined_call_operand.hbm [shape: f32[16,128], index: 6, kind: output, shape index: {0}]
  %s7 = inlined_call_operand.hbm [shape: f32[16,128], index: 7, kind: output, shape index: {1}]
  %8 = xla_tuple %s6, %s7
  %s9 = sld [smem:[#allocation0]]
  $region42: #{tpu_custom_call.1} parent=0
    _
  %s11 = ssub.s32 1, %s9
  %s12 = scalar_select 0, %s11, %s9
  $region1: #{tpu_custom_call.1} parent=0
    #allocation2 [shape = 'u8[8192]{0}', space=vmem, size = 0x2000, scoped, tag = 'output window, operand 0, single buffered']
    #allocation3 [shape = 's32[1]{0}', space=sflag, size = 0x4, scoped, tag = 'scoped memory for tpu_custom_call.1']
    #allocation4 [shape = 'u8[8192]{0}', space=vmem, size = 0x2000, scoped, tag = 'output window, operand 1, single buffered']
    #allocation5 [shape = 's32[1]{0}', space=sflag, size = 0x4, scoped, tag = 'scoped memory for tpu_custom_call.1']
    %13 = vsyncpa [#allocation3], 0
    %14 = vsyncpa [#allocation5], 0
    // Predicated region
    $region2: #{tpu_custom_call.1} parent=1 // pred_check
      _
    $region3: #{tpu_custom_call.1} parent=1 // pred_check_branch
      %16 = sbr.rel (0) target = $region5
    $region4: #{tpu_custom_call.1} parent=1 // pred_region
      _
    $region5: #{tpu_custom_call.1} parent=1 // pred_fallthru
      _
    // Predicated region
    $region6: #{tpu_custom_call.1} parent=1 // pred_check
      _
    $region7: #{tpu_custom_call.1} parent=1 // pred_check_branch
      %18 = sbr.rel (0) target = $region9
    $region8: #{tpu_custom_call.1} parent=1 // pred_region
      _
    $region9: #{tpu_custom_call.1} parent=1 // pred_fallthru
      _
    // Predicated region
    $region10: #{tpu_custom_call.1} parent=1 // pred_check
      _
    $region11: #{tpu_custom_call.1} parent=1 // pred_check_branch
      %20 = sbr.rel (0) target = $region13
    $region12: #{tpu_custom_call.1} parent=1 // pred_region
      _
    $region13: #{tpu_custom_call.1} parent=1 // pred_fallthru
      _
    // Predicated region
    $region14: #{tpu_custom_call.1} parent=1 // pred_check
      _
    $region15: #{tpu_custom_call.1} parent=1 // pred_check_branch
      %22 = sbr.rel (0) target = $region17
    $region16: #{tpu_custom_call.1} parent=1 // pred_region
      _
    $region17: #{tpu_custom_call.1} parent=1 // pred_fallthru
      _
    // Predicated region
    $region18: #{tpu_custom_call.1} parent=1 // pred_check
      _
    $region19: #{tpu_custom_call.1} parent=1 // pred_check_branch
      %24 = sbr.rel (0) target = $region21
    $region20: #{tpu_custom_call.1} parent=1 // pred_region
      _
    $region21: #{tpu_custom_call.1} parent=1 // pred_fallthru
      _
    // Predicated region
    $region22: #{tpu_custom_call.1} parent=1 // pred_check
      _
    $region23: #{tpu_custom_call.1} parent=1 // pred_check_branch
      %26 = sbr.rel (0) target = $region25
    $region24: #{tpu_custom_call.1} parent=1 // pred_region
      _
    $region25: #{tpu_custom_call.1} parent=1 // pred_fallthru
      _
    %v28 = vld [vmem:[%s0] sm:$0xf]
    %v29 = vld [vmem:[%s0 + $0x4] sm:$0xf]
    %v30 = vld [vmem:[%s0 + $0x8] sm:$0xf]
    %v31 = vld [vmem:[%s0 + $0xc] sm:$0xf]
    %v32 = vld [vmem:[%s0 + $0x10] sm:$0xf]
    %v33 = vld [vmem:[%s0 + $0x14] sm:$0xf]
    %v34 = vld [vmem:[%s0 + $0x18] sm:$0xf]
    %v35 = vld [vmem:[%s0 + $0x1c] sm:$0xf]
    %v36 = vld [vmem:[%s0 + $0x20] sm:$0xf]
    %v37 = vld [vmem:[%s0 + $0x24] sm:$0xf]
    %v38 = vld [vmem:[%s0 + $0x28] sm:$0xf]
    %v39 = vld [vmem:[%s0 + $0x2c] sm:$0xf]
    %v40 = vld [vmem:[%s0 + $0x30] sm:$0xf]
    %v41 = vld [vmem:[%s0 + $0x34] sm:$0xf]
    %v42 = vld [vmem:[%s0 + $0x38] sm:$0xf]
    %v43 = vld [vmem:[%s0 + $0x3c] sm:$0xf]
    %v44 = vld [vmem:[%s0 + $0x40] sm:$0xf]
    %v45 = vld [vmem:[%s0 + $0x44] sm:$0xf]
    %v46 = vld [vmem:[%s0 + $0x48] sm:$0xf]
    %v47 = vld [vmem:[%s0 + $0x4c] sm:$0xf]
    %v48 = vld [vmem:[%s0 + $0x50] sm:$0xf]
    %v49 = vld [vmem:[%s0 + $0x54] sm:$0xf]
    %v50 = vld [vmem:[%s0 + $0x58] sm:$0xf]
    %v51 = vld [vmem:[%s0 + $0x5c] sm:$0xf]
    %v52 = vld [vmem:[%s0 + $0x60] sm:$0xf]
    %v53 = vld [vmem:[%s0 + $0x64] sm:$0xf]
    %v54 = vld [vmem:[%s0 + $0x68] sm:$0xf]
    %v55 = vld [vmem:[%s0 + $0x6c] sm:$0xf]
    %v56 = vld [vmem:[%s0 + $0x70] sm:$0xf]
    %v57 = vld [vmem:[%s0 + $0x74] sm:$0xf]
    %v58 = vld [vmem:[%s0 + $0x78] sm:$0xf]
    %v59 = vld [vmem:[%s0 + $0x7c] sm:$0xf]
    %v60 = vld [vmem:[%s2] sm:$0xf]
    %v61 = vld [vmem:[%s2 + $0x4] sm:$0xf]
    %v62 = vld [vmem:[%s2 + $0x8] sm:$0xf]
    %v63 = vld [vmem:[%s2 + $0xc] sm:$0xf]
    %v96 = vunpack.c.l.b16 %v28
    %v97 = vunpack.c.l.b16 %v29
    %v98 = vunpack.c.l.b16 %v30
    %v99 = vunpack.c.l.b16 %v31
    %v100 = vunpack.c.l.b16 %v32
    %v101 = vunpack.c.l.b16 %v33
    %v102 = vunpack.c.l.b16 %v34
    %v103 = vunpack.c.l.b16 %v35
    %v104 = vunpack.c.l.b16 %v36
    %v105 = vunpack.c.l.b16 %v37
    %v106 = vunpack.c.l.b16 %v38
    %v107 = vunpack.c.l.b16 %v39
    %v108 = vunpack.c.l.b16 %v40
    %v109 = vunpack.c.l.b16 %v41
    %v110 = vunpack.c.l.b16 %v42
    %v111 = vunpack.c.l.b16 %v43
    %v112 = vunpack.c.l.b16 %v44
    %v113 = vunpack.c.l.b16 %v45
    %v114 = vunpack.c.l.b16 %v46
    %v115 = vunpack.c.l.b16 %v47
    %v116 = vunpack.c.l.b16 %v48
    %v117 = vunpack.c.l.b16 %v49
    %v118 = vunpack.c.l.b16 %v50
    %v119 = vunpack.c.l.b16 %v51
    %v120 = vunpack.c.l.b16 %v52
    %v121 = vunpack.c.l.b16 %v53
    %v122 = vunpack.c.l.b16 %v54
    %v123 = vunpack.c.l.b16 %v55
    %v124 = vunpack.c.l.b16 %v56
    %v125 = vunpack.c.l.b16 %v57
    %v126 = vunpack.c.l.b16 %v58
    %v127 = vunpack.c.l.b16 %v59
    %v128 = vpack.c.b16 %v97, %v96
    %v129 = vpack.c.b16 %v99, %v98
    %v130 = vpack.c.b16 %v101, %v100
    %v131 = vpack.c.b16 %v103, %v102
    %v132 = vpack.c.b16 %v105, %v104
    %v133 = vpack.c.b16 %v107, %v106
    %v134 = vpack.c.b16 %v109, %v108
    %v135 = vpack.c.b16 %v111, %v110
    %v136 = vpack.c.b16 %v113, %v112
    %v137 = vpack.c.b16 %v115, %v114
    %v138 = vpack.c.b16 %v117, %v116
    %v139 = vpack.c.b16 %v119, %v118
    %v140 = vpack.c.b16 %v121, %v120
    %v141 = vpack.c.b16 %v123, %v122
    %v142 = vpack.c.b16 %v125, %v124
    %v143 = vpack.c.b16 %v127, %v126
    %v148 = vunpack.c.l.b16 %v60
    %v149 = vunpack.c.l.b16 %v61
    %v150 = vunpack.c.l.b16 %v62
    %v151 = vunpack.c.l.b16 %v63
    %v152 = vpack.c.b16 %v149, %v148
    %v153 = vpack.c.b16 %v151, %v150
    %vm156 = vcmask 261120
    %v158 = vsel %vm156, %v128, 0
    %v161 = vsel %vm156, %v129, 0
    %v164 = vsel %vm156, %v130, 0
    %v167 = vsel %vm156, %v131, 0
    %v170 = vsel %vm156, %v132, 0
    %v173 = vsel %vm156, %v133, 0
    %v176 = vsel %vm156, %v134, 0
    %v179 = vsel %vm156, %v135, 0
    %v182 = vsel %vm156, %v136, 0
    %v185 = vsel %vm156, %v137, 0
    %v188 = vsel %vm156, %v138, 0
    %v191 = vsel %vm156, %v139, 0
    %v194 = vsel %vm156, %v140, 0
    %v197 = vsel %vm156, %v141, 0
    %v200 = vsel %vm156, %v142, 0
    %v203 = vsel %vm156, %v143, 0
    %205 = vmatprep.subr.bf16.mxu0 0
    %206 = vmatpush1.bf16.msra.mxu0 %v152
    %207 = vmatprep.subr.bf16.mxu0 0
    %208 = vmatpush1.bf16.msra.mxu0 %v153
    %209 = vmatprep.subr.bf16.mxu0 0
    %210 = vmatpush1.bf16.msra.mxu0 0
    %211 = vmatprep.subr.bf16.mxu0 0
    %212 = vmatpush1.bf16.msra.mxu0 0
    %213 = vmatprep.subr.bf16.mxu0 0
    %214 = vmatpush1.bf16.msra.mxu0 0
    %215 = vmatprep.subr.bf16.mxu0 0
    %216 = vmatpush1.bf16.msra.mxu0 0
    %217 = vmatprep.subr.bf16.mxu0 0
    %218 = vmatpush1.bf16.msra.mxu0 0
    %219 = vmatprep.subr.bf16.mxu0 0
    %220 = vmatpush1.bf16.msra.mxu0 0
    %221 = vmatprep.subr.bf16.mxu0 0
    %222 = vmatpush1.bf16.msra.mxu0 0
    %223 = vmatprep.subr.bf16.mxu0 0
    %224 = vmatpush1.bf16.msra.mxu0 0
    %225 = vmatprep.subr.bf16.mxu0 0
    %226 = vmatpush1.bf16.msra.mxu0 0
    %227 = vmatprep.subr.bf16.mxu0 0
    %228 = vmatpush1.bf16.msra.mxu0 0
    %229 = vmatprep.subr.bf16.mxu0 0
    %230 = vmatpush1.bf16.msra.mxu0 0
    %231 = vmatprep.subr.bf16.mxu0 0
    %232 = vmatpush1.bf16.msra.mxu0 0
    %233 = vmatprep.subr.bf16.mxu0 0
    %234 = vmatpush1.bf16.msra.mxu0 0
    %235 = vmatprep.subr.bf16.mxu0 0
    %236 = vmatpush1.bf16.msra.mxu0 0
    %237 = vmatprep.mubr.bf16.mxu0 0
    %238 = vmatmul.mubr.bf16.gmra.mrb[0].mxu0 %v158
    %v239 = vpop.f32.mrb[0].mxu0
    %v240 = vadd.f32 0.0, %v239
    %v241 = vpop.f32.mrb[0].mxu0
    %v242 = vpop.f32.mrb[0].mxu0
    %v243 = vadd.f32 0.0, %v242
    %v244 = vpop.f32.mrb[0].mxu0
    %245 = vmatprep.mubr.bf16.mxu0 0
    %246 = vmatmul.mubr.bf16.gmra.mrb[0].mxu0 %v161
    %v247 = vpop.f32.mrb[0].mxu0
    %v248 = vadd.f32 0.0, %v247
    %v249 = vpop.f32.mrb[0].mxu0
    %v250 = vpop.f32.mrb[0].mxu0
    %v251 = vadd.f32 0.0, %v250
    %v252 = vpop.f32.mrb[0].mxu0
    %253 = vmatprep.mubr.bf16.mxu0 0
    %254 = vmatmul.mubr.bf16.gmra.mrb[0].mxu0 %v164
    %v255 = vpop.f32.mrb[0].mxu0
    %v256 = vadd.f32 0.0, %v255
    %v257 = vpop.f32.mrb[0].mxu0
    %v258 = vpop.f32.mrb[0].mxu0
    %v259 = vadd.f32 0.0, %v258
    %v260 = vpop.f32.mrb[0].mxu0
    %261 = vmatprep.mubr.bf16.mxu0 0
    %262 = vmatmul.mubr.bf16.gmra.mrb[0].mxu0 %v167
    %v263 = vpop.f32.mrb[0].mxu0
    %v264 = vadd.f32 0.0, %v263
    %v265 = vpop.f32.mrb[0].mxu0
    %v266 = vpop.f32.mrb[0].mxu0
    %v267 = vadd.f32 0.0, %v266
    %v268 = vpop.f32.mrb[0].mxu0
    %269 = vmatprep.mubr.bf16.mxu0 0
    %270 = vmatmul.mubr.bf16.gmra.mrb[0].mxu0 %v170
    %v271 = vpop.f32.mrb[0].mxu0
    %v272 = vadd.f32 0.0, %v271
    %v273 = vpop.f32.mrb[0].mxu0
    %v274 = vpop.f32.mrb[0].mxu0
    %v275 = vadd.f32 0.0, %v274
    %v276 = vpop.f32.mrb[0].mxu0
    %277 = vmatprep.mubr.bf16.mxu0 0
    %278 = vmatmul.mubr.bf16.gmra.mrb[0].mxu0 %v173
    %v279 = vpop.f32.mrb[0].mxu0
    %v280 = vadd.f32 0.0, %v279
    %v281 = vpop.f32.mrb[0].mxu0
    %v282 = vpop.f32.mrb[0].mxu0
    %v283 = vadd.f32 0.0, %v282
    %v284 = vpop.f32.mrb[0].mxu0
    %285 = vmatprep.mubr.bf16.mxu0 0
    %286 = vmatmul.mubr.bf16.gmra.mrb[0].mxu0 %v176
    %v287 = vpop.f32.mrb[0].mxu0
    %v288 = vadd.f32 0.0, %v287
    %v289 = vpop.f32.mrb[0].mxu0
    %v290 = vpop.f32.mrb[0].mxu0
    %v291 = vadd.f32 0.0, %v290
    %v292 = vpop.f32.mrb[0].mxu0
    %293 = vmatprep.mubr.bf16.mxu0 0
    %294 = vmatmul.mubr.bf16.gmra.mrb[0].mxu0 %v179
    %v295 = vpop.f32.mrb[0].mxu0
    %v296 = vadd.f32 0.0, %v295
    %v297 = vpop.f32.mrb[0].mxu0
    %v298 = vpop.f32.mrb[0].mxu0
    %v299 = vadd.f32 0.0, %v298
    %v300 = vpop.f32.mrb[0].mxu0
    %301 = vmatprep.mubr.bf16.mxu0 0
    %302 = vmatmul.mubr.bf16.gmra.mrb[0].mxu0 %v182
    %v303 = vpop.f32.mrb[0].mxu0
    %v304 = vadd.f32 0.0, %v303
    %v305 = vpop.f32.mrb[0].mxu0
    %v306 = vpop.f32.mrb[0].mxu0
    %v307 = vadd.f32 0.0, %v306
    %v308 = vpop.f32.mrb[0].mxu0
    %309 = vmatprep.mubr.bf16.mxu0 0
    %310 = vmatmul.mubr.bf16.gmra.mrb[0].mxu0 %v185
    %v311 = vpop.f32.mrb[0].mxu0
    %v312 = vadd.f32 0.0, %v311
    %v313 = vpop.f32.mrb[0].mxu0
    %v314 = vpop.f32.mrb[0].mxu0
    %v315 = vadd.f32 0.0, %v314
    %v316 = vpop.f32.mrb[0].mxu0
    %317 = vmatprep.mubr.bf16.mxu0 0
    %318 = vmatmul.mubr.bf16.gmra.mrb[0].mxu0 %v188
    %v319 = vpop.f32.mrb[0].mxu0
    %v320 = vadd.f32 0.0, %v319
    %v321 = vpop.f32.mrb[0].mxu0
    %v322 = vpop.f32.mrb[0].mxu0
    %v323 = vadd.f32 0.0, %v322
    %v324 = vpop.f32.mrb[0].mxu0
    %325 = vmatprep.mubr.bf16.mxu0 0
    %326 = vmatmul.mubr.bf16.gmra.mrb[0].mxu0 %v191
    %v327 = vpop.f32.mrb[0].mxu0
    %v328 = vadd.f32 0.0, %v327
    %v329 = vpop.f32.mrb[0].mxu0
    %v330 = vpop.f32.mrb[0].mxu0
    %v331 = vadd.f32 0.0, %v330
    %v332 = vpop.f32.mrb[0].mxu0
    %333 = vmatprep.mubr.bf16.mxu0 0
    %334 = vmatmul.mubr.bf16.gmra.mrb[0].mxu0 %v194
    %v335 = vpop.f32.mrb[0].mxu0
    %v336 = vadd.f32 0.0, %v335
    %v337 = vpop.f32.mrb[0].mxu0
    %v338 = vpop.f32.mrb[0].mxu0
    %v339 = vadd.f32 0.0, %v338
    %v340 = vpop.f32.mrb[0].mxu0
    %341 = vmatprep.mubr.bf16.mxu0 0
    %342 = vmatmul.mubr.bf16.gmra.mrb[0].mxu0 %v197
    %v343 = vpop.f32.mrb[0].mxu0
    %v344 = vadd.f32 0.0, %v343
    %v345 = vpop.f32.mrb[0].mxu0
    %v346 = vpop.f32.mrb[0].mxu0
    %v347 = vadd.f32 0.0, %v346
    %v348 = vpop.f32.mrb[0].mxu0
    %349 = vmatprep.mubr.bf16.mxu0 0
    %350 = vmatmul.mubr.bf16.gmra.mrb[0].mxu0 %v200
    %v351 = vpop.f32.mrb[0].mxu0
    %v352 = vadd.f32 0.0, %v351
    %v353 = vpop.f32.mrb[0].mxu0
    %v354 = vpop.f32.mrb[0].mxu0
    %v355 = vadd.f32 0.0, %v354
    %v356 = vpop.f32.mrb[0].mxu0
    %357 = vmatprep.mubr.bf16.mxu0 0
    %358 = vmatmul.mubr.bf16.gmra.mrb[0].mxu0 %v203
    %v359 = vpop.f32.mrb[0].mxu0
    %v360 = vadd.f32 0.0, %v359
    %v361 = vpop.f32.mrb[0].mxu0
    %v362 = vpop.f32.mrb[0].mxu0
    %v363 = vadd.f32 0.0, %v362
    %v364 = vpop.f32.mrb[0].mxu0
    %365 = vdwg.mxu0
    %v366 = vld [vmem:[%s1] sm:$0xff]
    %v367 = vld [vmem:[%s1 + $0x8] sm:$0xff]
    %v368 = vld [vmem:[%s1 + $0x10] sm:$0xff]
    %v369 = vld [vmem:[%s1 + $0x18] sm:$0xff]
    %v370 = vld [vmem:[%s1 + $0x20] sm:$0xff]
    %v371 = vld [vmem:[%s1 + $0x28] sm:$0xff]
    %v372 = vld [vmem:[%s1 + $0x30] sm:$0xff]
    %v373 = vld [vmem:[%s1 + $0x38] sm:$0xff]
    %v374 = vld [vmem:[%s1 + $0x40] sm:$0xff]
    %v375 = vld [vmem:[%s1 + $0x48] sm:$0xff]
    %v376 = vld [vmem:[%s1 + $0x50] sm:$0xff]
    %v377 = vld [vmem:[%s1 + $0x58] sm:$0xff]
    %v378 = vld [vmem:[%s1 + $0x60] sm:$0xff]
    %v379 = vld [vmem:[%s1 + $0x68] sm:$0xff]
    %v380 = vld [vmem:[%s1 + $0x70] sm:$0xff]
    %v381 = vld [vmem:[%s1 + $0x78] sm:$0xff]
    %v382 = vld [vmem:[%s1 + $0x80] sm:$0xff]
    %v383 = vld [vmem:[%s1 + $0x88] sm:$0xff]
    %v384 = vld [vmem:[%s1 + $0x90] sm:$0xff]
    %v385 = vld [vmem:[%s1 + $0x98] sm:$0xff]
    %v386 = vld [vmem:[%s1 + $0xa0] sm:$0xff]
    %v387 = vld [vmem:[%s1 + $0xa8] sm:$0xff]
    %v388 = vld [vmem:[%s1 + $0xb0] sm:$0xff]
    %v389 = vld [vmem:[%s1 + $0xb8] sm:$0xff]
    %v390 = vld [vmem:[%s1 + $0xc0] sm:$0xff]
    %v391 = vld [vmem:[%s1 + $0xc8] sm:$0xff]
    %v392 = vld [vmem:[%s1 + $0xd0] sm:$0xff]
    %v393 = vld [vmem:[%s1 + $0xd8] sm:$0xff]
    %v394 = vld [vmem:[%s1 + $0xe0] sm:$0xff]
    %v395 = vld [vmem:[%s1 + $0xe8] sm:$0xff]
    %v396 = vld [vmem:[%s1 + $0xf0] sm:$0xff]
    %v397 = vld [vmem:[%s1 + $0xf8] sm:$0xff]
    %399 = vset.pattern.permute.xlu0 0
    %400 = vperm.xlu0 %399, %v366
    %v401 = vpop.permute.xlu0 %400
    %404 = vset.pattern.permute.xlu0 0
    %405 = vperm.xlu0 %404, %v367
    %v406 = vpop.permute.xlu0 %405
    %409 = vset.pattern.permute.xlu0 0
    %410 = vperm.xlu0 %409, %v368
    %v411 = vpop.permute.xlu0 %410
    %414 = vset.pattern.permute.xlu0 0
    %415 = vperm.xlu0 %414, %v369
    %v416 = vpop.permute.xlu0 %415
    %419 = vset.pattern.permute.xlu0 0
    %420 = vperm.xlu0 %419, %v370
    %v421 = vpop.permute.xlu0 %420
    %424 = vset.pattern.permute.xlu0 0
    %425 = vperm.xlu0 %424, %v371
    %v426 = vpop.permute.xlu0 %425
    %429 = vset.pattern.permute.xlu0 0
    %430 = vperm.xlu0 %429, %v372
    %v431 = vpop.permute.xlu0 %430
    %434 = vset.pattern.permute.xlu0 0
    %435 = vperm.xlu0 %434, %v373
    %v436 = vpop.permute.xlu0 %435
    %439 = vset.pattern.permute.xlu0 0
    %440 = vperm.xlu0 %439, %v374
    %v441 = vpop.permute.xlu0 %440
    %444 = vset.pattern.permute.xlu0 0
    %445 = vperm.xlu0 %444, %v375
    %v446 = vpop.permute.xlu0 %445
    %449 = vset.pattern.permute.xlu0 0
    %450 = vperm.xlu0 %449, %v376
    %v451 = vpop.permute.xlu0 %450
    %454 = vset.pattern.permute.xlu0 0
    %455 = vperm.xlu0 %454, %v377
    %v456 = vpop.permute.xlu0 %455
    %459 = vset.pattern.permute.xlu0 0
    %460 = vperm.xlu0 %459, %v378
    %v461 = vpop.permute.xlu0 %460
    %464 = vset.pattern.permute.xlu0 0
    %465 = vperm.xlu0 %464, %v379
    %v466 = vpop.permute.xlu0 %465
    %469 = vset.pattern.permute.xlu0 0
    %470 = vperm.xlu0 %469, %v380
    %v471 = vpop.permute.xlu0 %470
    %474 = vset.pattern.permute.xlu0 0
    %475 = vperm.xlu0 %474, %v381
    %v476 = vpop.permute.xlu0 %475
    %479 = vset.pattern.permute.xlu0 0
    %480 = vperm.xlu0 %479, %v382
    %v481 = vpop.permute.xlu0 %480
    %484 = vset.pattern.permute.xlu0 0
    %485 = vperm.xlu0 %484, %v383
    %v486 = vpop.permute.xlu0 %485
    %489 = vset.pattern.permute.xlu0 0
    %490 = vperm.xlu0 %489, %v384
    %v491 = vpop.permute.xlu0 %490
    %494 = vset.pattern.permute.xlu0 0
    %495 = vperm.xlu0 %494, %v385
    %v496 = vpop.permute.xlu0 %495
    %499 = vset.pattern.permute.xlu0 0
    %500 = vperm.xlu0 %499, %v386
    %v501 = vpop.permute.xlu0 %500
    %504 = vset.pattern.permute.xlu0 0
    %505 = vperm.xlu0 %504, %v387
    %v506 = vpop.permute.xlu0 %505
    %509 = vset.pattern.permute.xlu0 0
    %510 = vperm.xlu0 %509, %v388
    %v511 = vpop.permute.xlu0 %510
    %514 = vset.pattern.permute.xlu0 0
    %515 = vperm.xlu0 %514, %v389
    %v516 = vpop.permute.xlu0 %515
    %519 = vset.pattern.permute.xlu0 0
    %520 = vperm.xlu0 %519, %v390
    %v521 = vpop.permute.xlu0 %520
    %524 = vset.pattern.permute.xlu0 0
    %525 = vperm.xlu0 %524, %v391
    %v526 = vpop.permute.xlu0 %525
    %529 = vset.pattern.permute.xlu0 0
    %530 = vperm.xlu0 %529, %v392
    %v531 = vpop.permute.xlu0 %530
    %534 = vset.pattern.permute.xlu0 0
    %535 = vperm.xlu0 %534, %v393
    %v536 = vpop.permute.xlu0 %535
    %539 = vset.pattern.permute.xlu0 0
    %540 = vperm.xlu0 %539, %v394
    %v541 = vpop.permute.xlu0 %540
    %544 = vset.pattern.permute.xlu0 0
    %545 = vperm.xlu0 %544, %v395
    %v546 = vpop.permute.xlu0 %545
    %549 = vset.pattern.permute.xlu0 0
    %550 = vperm.xlu0 %549, %v396
    %v551 = vpop.permute.xlu0 %550
    %554 = vset.pattern.permute.xlu0 0
    %555 = vperm.xlu0 %554, %v397
    %v556 = vpop.permute.xlu0 %555
    %v558 = vadd.f32 %v401, %v240
    %v559 = vadd.f32 %v406, %v243
    %v560 = vadd.f32 %v411, %v248
    %v561 = vadd.f32 %v416, %v251
    %v562 = vadd.f32 %v421, %v256
    %v563 = vadd.f32 %v426, %v259
    %v564 = vadd.f32 %v431, %v264
    %v565 = vadd.f32 %v436, %v267
    %v566 = vadd.f32 %v441, %v272
    %v567 = vadd.f32 %v446, %v275
    %v568 = vadd.f32 %v451, %v280
    %v569 = vadd.f32 %v456, %v283
    %v570 = vadd.f32 %v461, %v288
    %v571 = vadd.f32 %v466, %v291
    %v572 = vadd.f32 %v471, %v296
    %v573 = vadd.f32 %v476, %v299
    %v574 = vadd.f32 %v481, %v304
    %v575 = vadd.f32 %v486, %v307
    %v576 = vadd.f32 %v491, %v312
    %v577 = vadd.f32 %v496, %v315
    %v578 = vadd.f32 %v501, %v320
    %v579 = vadd.f32 %v506, %v323
    %v580 = vadd.f32 %v511, %v328
    %v581 = vadd.f32 %v516, %v331
    %v582 = vadd.f32 %v521, %v336
    %v583 = vadd.f32 %v526, %v339
    %v584 = vadd.f32 %v531, %v344
    %v585 = vadd.f32 %v536, %v347
    %v586 = vadd.f32 %v541, %v352
    %v587 = vadd.f32 %v546, %v355
    %v588 = vadd.f32 %v551, %v360
    %v589 = vadd.f32 %v556, %v363
    %v590 = vld [vmem:[%s3] sm:$0x1]
    %v592 = vlaneseq
    %v593 = vshrl.u32 %v592, 7
    %v594 = vsub.s32 0, %v593
    %v595 = vrot.slane %v590, %v594
    %v597 = vadd.f32 %v558, %v595
    %v598 = vadd.f32 %v559, %v595
    %v599 = vadd.f32 %v560, %v595
    %v600 = vadd.f32 %v561, %v595
    %v601 = vadd.f32 %v562, %v595
    %v602 = vadd.f32 %v563, %v595
    %v603 = vadd.f32 %v564, %v595
    %v604 = vadd.f32 %v565, %v595
    %v605 = vadd.f32 %v566, %v595
    %v606 = vadd.f32 %v567, %v595
    %v607 = vadd.f32 %v568, %v595
    %v608 = vadd.f32 %v569, %v595
    %v609 = vadd.f32 %v570, %v595
    %v610 = vadd.f32 %v571, %v595
    %v611 = vadd.f32 %v572, %v595
    %v612 = vadd.f32 %v573, %v595
    %v613 = vadd.f32 %v574, %v595
    %v614 = vadd.f32 %v575, %v595
    %v615 = vadd.f32 %v576, %v595
    %v616 = vadd.f32 %v577, %v595
    %v617 = vadd.f32 %v578, %v595
    %v618 = vadd.f32 %v579, %v595
    %v619 = vadd.f32 %v580, %v595
    %v620 = vadd.f32 %v581, %v595
    %v621 = vadd.f32 %v582, %v595
    %v622 = vadd.f32 %v583, %v595
    %v623 = vadd.f32 %v584, %v595
    %v624 = vadd.f32 %v585, %v595
    %v625 = vadd.f32 %v586, %v595
    %v626 = vadd.f32 %v587, %v595
    %v627 = vadd.f32 %v588, %v595
    %v628 = vadd.f32 %v589, %v595
    %v629 = vmax.f32 %v597, 0.0
    %v630 = vmax.f32 %v598, 0.0
    %v631 = vmax.f32 %v599, 0.0
    %v632 = vmax.f32 %v600, 0.0
    %v633 = vmax.f32 %v601, 0.0
    %v634 = vmax.f32 %v602, 0.0
    %v635 = vmax.f32 %v603, 0.0
    %v636 = vmax.f32 %v604, 0.0
    %v637 = vmax.f32 %v605, 0.0
    %v638 = vmax.f32 %v606, 0.0
    %v639 = vmax.f32 %v607, 0.0
    %v640 = vmax.f32 %v608, 0.0
    %v641 = vmax.f32 %v609, 0.0
    %v642 = vmax.f32 %v610, 0.0
    %v643 = vmax.f32 %v611, 0.0
    %v644 = vmax.f32 %v612, 0.0
    %v645 = vmax.f32 %v613, 0.0
    %v646 = vmax.f32 %v614, 0.0
    %v647 = vmax.f32 %v615, 0.0
    %v648 = vmax.f32 %v616, 0.0
    %v649 = vmax.f32 %v617, 0.0
    %v650 = vmax.f32 %v618, 0.0
    %v651 = vmax.f32 %v619, 0.0
    %v652 = vmax.f32 %v620, 0.0
    %v653 = vmax.f32 %v621, 0.0
    %v654 = vmax.f32 %v622, 0.0
    %v655 = vmax.f32 %v623, 0.0
    %v656 = vmax.f32 %v624, 0.0
    %v657 = vmax.f32 %v625, 0.0
    %v658 = vmax.f32 %v626, 0.0
    %v659 = vmax.f32 %v627, 0.0
    %v660 = vmax.f32 %v628, 0.0
    %v661 = vmin.f32 %v629, %v630
    %v662 = vrot.slane %v661, 4
    %v663 = vmin.f32 %v661, %v662
    %v664 = vrot.slane %v663, 2
    %v665 = vmin.f32 %v663, %v664
    %v666 = vrot.slane %v665, 1
    %v667 = vmin.f32 %v665, %v666
    %v668 = vmin.f32 %v631, %v632
    %v669 = vrot.slane %v668, 4
    %v670 = vmin.f32 %v668, %v669
    %v671 = vrot.slane %v670, 2
    %v672 = vmin.f32 %v670, %v671
    %v673 = vrot.slane %v672, 1
    %v674 = vmin.f32 %v672, %v673
    %v675 = vmin.f32 %v633, %v634
    %v676 = vrot.slane %v675, 4
    %v677 = vmin.f32 %v675, %v676
    %v678 = vrot.slane %v677, 2
    %v679 = vmin.f32 %v677, %v678
    %v680 = vrot.slane %v679, 1
    %v681 = vmin.f32 %v679, %v680
    %v682 = vmin.f32 %v635, %v636
    %v683 = vrot.slane %v682, 4
    %v684 = vmin.f32 %v682, %v683
    %v685 = vrot.slane %v684, 2
    %v686 = vmin.f32 %v684, %v685
    %v687 = vrot.slane %v686, 1
    %v688 = vmin.f32 %v686, %v687
    %v689 = vmin.f32 %v637, %v638
    %v690 = vrot.slane %v689, 4
    %v691 = vmin.f32 %v689, %v690
    %v692 = vrot.slane %v691, 2
    %v693 = vmin.f32 %v691, %v692
    %v694 = vrot.slane %v693, 1
    %v695 = vmin.f32 %v693, %v694
    %v696 = vmin.f32 %v639, %v640
    %v697 = vrot.slane %v696, 4
    %v698 = vmin.f32 %v696, %v697
    %v699 = vrot.slane %v698, 2
    %v700 = vmin.f32 %v698, %v699
    %v701 = vrot.slane %v700, 1
    %v702 = vmin.f32 %v700, %v701
    %v703 = vmin.f32 %v641, %v642
    %v704 = vrot.slane %v703, 4
    %v705 = vmin.f32 %v703, %v704
    %v706 = vrot.slane %v705, 2
    %v707 = vmin.f32 %v705, %v706
    %v708 = vrot.slane %v707, 1
    %v709 = vmin.f32 %v707, %v708
    %v710 = vmin.f32 %v643, %v644
    %v711 = vrot.slane %v710, 4
    %v712 = vmin.f32 %v710, %v711
    %v713 = vrot.slane %v712, 2
    %v714 = vmin.f32 %v712, %v713
    %v715 = vrot.slane %v714, 1
    %v716 = vmin.f32 %v714, %v715
    %v717 = vmin.f32 %v645, %v646
    %v718 = vrot.slane %v717, 4
    %v719 = vmin.f32 %v717, %v718
    %v720 = vrot.slane %v719, 2
    %v721 = vmin.f32 %v719, %v720
    %v722 = vrot.slane %v721, 1
    %v723 = vmin.f32 %v721, %v722
    %v724 = vmin.f32 %v647, %v648
    %v725 = vrot.slane %v724, 4
    %v726 = vmin.f32 %v724, %v725
    %v727 = vrot.slane %v726, 2
    %v728 = vmin.f32 %v726, %v727
    %v729 = vrot.slane %v728, 1
    %v730 = vmin.f32 %v728, %v729
    %v731 = vmin.f32 %v649, %v650
    %v732 = vrot.slane %v731, 4
    %v733 = vmin.f32 %v731, %v732
    %v734 = vrot.slane %v733, 2
    %v735 = vmin.f32 %v733, %v734
    %v736 = vrot.slane %v735, 1
    %v737 = vmin.f32 %v735, %v736
    %v738 = vmin.f32 %v651, %v652
    %v739 = vrot.slane %v738, 4
    %v740 = vmin.f32 %v738, %v739
    %v741 = vrot.slane %v740, 2
    %v742 = vmin.f32 %v740, %v741
    %v743 = vrot.slane %v742, 1
    %v744 = vmin.f32 %v742, %v743
    %v745 = vmin.f32 %v653, %v654
    %v746 = vrot.slane %v745, 4
    %v747 = vmin.f32 %v745, %v746
    %v748 = vrot.slane %v747, 2
    %v749 = vmin.f32 %v747, %v748
    %v750 = vrot.slane %v749, 1
    %v751 = vmin.f32 %v749, %v750
    %v752 = vmin.f32 %v655, %v656
    %v753 = vrot.slane %v752, 4
    %v754 = vmin.f32 %v752, %v753
    %v755 = vrot.slane %v754, 2
    %v756 = vmin.f32 %v754, %v755
    %v757 = vrot.slane %v756, 1
    %v758 = vmin.f32 %v756, %v757
    %v759 = vmin.f32 %v657, %v658
    %v760 = vrot.slane %v759, 4
    %v761 = vmin.f32 %v759, %v760
    %v762 = vrot.slane %v761, 2
    %v763 = vmin.f32 %v761, %v762
    %v764 = vrot.slane %v763, 1
    %v765 = vmin.f32 %v763, %v764
    %v766 = vmin.f32 %v659, %v660
    %v767 = vrot.slane %v766, 4
    %v768 = vmin.f32 %v766, %v767
    %v769 = vrot.slane %v768, 2
    %v770 = vmin.f32 %v768, %v769
    %v771 = vrot.slane %v770, 1
    %v772 = vmin.f32 %v770, %v771
    %v773 = vadd.f32 %v667, 1e-14
    %v774 = vadd.f32 %v674, 1e-14
    %v775 = vadd.f32 %v681, 1e-14
    %v776 = vadd.f32 %v688, 1e-14
    %v777 = vadd.f32 %v695, 1e-14
    %v778 = vadd.f32 %v702, 1e-14
    %v779 = vadd.f32 %v709, 1e-14
    %v780 = vadd.f32 %v716, 1e-14
    %v781 = vadd.f32 %v723, 1e-14
    %v782 = vadd.f32 %v730, 1e-14
    %v783 = vadd.f32 %v737, 1e-14
    %v784 = vadd.f32 %v744, 1e-14
    %v785 = vadd.f32 %v751, 1e-14
    %v786 = vadd.f32 %v758, 1e-14
    %v787 = vadd.f32 %v765, 1e-14
    %v788 = vadd.f32 %v772, 1e-14
    %v789 = vrsqrt.pop %v773
    %v790 = vmul.f32 %v773, %v789
    %vm791 = vcmp.eq.f32.partialorder %v773, inf
    %v792 = vsel %vm791, %v773, %v790
    %vm793 = vcmp.eq.f32.partialorder %v773, 0.0
    %v794 = vand.u32 %v773, 2147483648
    %v795 = vsel %vm793, %v794, %v792
    %v796 = vrsqrt.pop %v774
    %v797 = vmul.f32 %v774, %v796
    %vm798 = vcmp.eq.f32.partialorder %v774, inf
    %v799 = vsel %vm798, %v774, %v797
    %vm800 = vcmp.eq.f32.partialorder %v774, 0.0
    %v801 = vand.u32 %v774, 2147483648
    %v802 = vsel %vm800, %v801, %v799
    %v803 = vrsqrt.pop %v775
    %v804 = vmul.f32 %v775, %v803
    %vm805 = vcmp.eq.f32.partialorder %v775, inf
    %v806 = vsel %vm805, %v775, %v804
    %vm807 = vcmp.eq.f32.partialorder %v775, 0.0
    %v808 = vand.u32 %v775, 2147483648
    %v809 = vsel %vm807, %v808, %v806
    %v810 = vrsqrt.pop %v776
    %v811 = vmul.f32 %v776, %v810
    %vm812 = vcmp.eq.f32.partialorder %v776, inf
    %v813 = vsel %vm812, %v776, %v811
    %vm814 = vcmp.eq.f32.partialorder %v776, 0.0
    %v815 = vand.u32 %v776, 2147483648
    %v816 = vsel %vm814, %v815, %v813
    %v817 = vrsqrt.pop %v777
    %v818 = vmul.f32 %v777, %v817
    %vm819 = vcmp.eq.f32.partialorder %v777, inf
    %v820 = vsel %vm819, %v777, %v818
    %vm821 = vcmp.eq.f32.partialorder %v777, 0.0
    %v822 = vand.u32 %v777, 2147483648
    %v823 = vsel %vm821, %v822, %v820
    %v824 = vrsqrt.pop %v778
    %v825 = vmul.f32 %v778, %v824
    %vm826 = vcmp.eq.f32.partialorder %v778, inf
    %v827 = vsel %vm826, %v778, %v825
    %vm828 = vcmp.eq.f32.partialorder %v778, 0.0
    %v829 = vand.u32 %v778, 2147483648
    %v830 = vsel %vm828, %v829, %v827
    %v831 = vrsqrt.pop %v779
    %v832 = vmul.f32 %v779, %v831
    %vm833 = vcmp.eq.f32.partialorder %v779, inf
    %v834 = vsel %vm833, %v779, %v832
    %vm835 = vcmp.eq.f32.partialorder %v779, 0.0
    %v836 = vand.u32 %v779, 2147483648
    %v837 = vsel %vm835, %v836, %v834
    %v838 = vrsqrt.pop %v780
    %v839 = vmul.f32 %v780, %v838
    %vm840 = vcmp.eq.f32.partialorder %v780, inf
    %v841 = vsel %vm840, %v780, %v839
    %vm842 = vcmp.eq.f32.partialorder %v780, 0.0
    %v843 = vand.u32 %v780, 2147483648
    %v844 = vsel %vm842, %v843, %v841
    %v845 = vrsqrt.pop %v781
    %v846 = vmul.f32 %v781, %v845
    %vm847 = vcmp.eq.f32.partialorder %v781, inf
    %v848 = vsel %vm847, %v781, %v846
    %vm849 = vcmp.eq.f32.partialorder %v781, 0.0
    %v850 = vand.u32 %v781, 2147483648
    %v851 = vsel %vm849, %v850, %v848
    %v852 = vrsqrt.pop %v782
    %v853 = vmul.f32 %v782, %v852
    %vm854 = vcmp.eq.f32.partialorder %v782, inf
    %v855 = vsel %vm854, %v782, %v853
    %vm856 = vcmp.eq.f32.partialorder %v782, 0.0
    %v857 = vand.u32 %v782, 2147483648
    %v858 = vsel %vm856, %v857, %v855
    %v859 = vrsqrt.pop %v783
    %v860 = vmul.f32 %v783, %v859
    %vm861 = vcmp.eq.f32.partialorder %v783, inf
    %v862 = vsel %vm861, %v783, %v860
    %vm863 = vcmp.eq.f32.partialorder %v783, 0.0
    %v864 = vand.u32 %v783, 2147483648
    %v865 = vsel %vm863, %v864, %v862
    %v866 = vrsqrt.pop %v784
    %v867 = vmul.f32 %v784, %v866
    %vm868 = vcmp.eq.f32.partialorder %v784, inf
    %v869 = vsel %vm868, %v784, %v867
    %vm870 = vcmp.eq.f32.partialorder %v784, 0.0
    %v871 = vand.u32 %v784, 2147483648
    %v872 = vsel %vm870, %v871, %v869
    %v873 = vrsqrt.pop %v785
    %v874 = vmul.f32 %v785, %v873
    %vm875 = vcmp.eq.f32.partialorder %v785, inf
    %v876 = vsel %vm875, %v785, %v874
    %vm877 = vcmp.eq.f32.partialorder %v785, 0.0
    %v878 = vand.u32 %v785, 2147483648
    %v879 = vsel %vm877, %v878, %v876
    %v880 = vrsqrt.pop %v786
    %v881 = vmul.f32 %v786, %v880
    %vm882 = vcmp.eq.f32.partialorder %v786, inf
    %v883 = vsel %vm882, %v786, %v881
    %vm884 = vcmp.eq.f32.partialorder %v786, 0.0
    %v885 = vand.u32 %v786, 2147483648
    %v886 = vsel %vm884, %v885, %v883
    %v887 = vrsqrt.pop %v787
    %v888 = vmul.f32 %v787, %v887
    %vm889 = vcmp.eq.f32.partialorder %v787, inf
    %v890 = vsel %vm889, %v787, %v888
    %vm891 = vcmp.eq.f32.partialorder %v787, 0.0
    %v892 = vand.u32 %v787, 2147483648
    %v893 = vsel %vm891, %v892, %v890
    %v894 = vrsqrt.pop %v788
    %v895 = vmul.f32 %v788, %v894
    %vm896 = vcmp.eq.f32.partialorder %v788, inf
    %v897 = vsel %vm896, %v788, %v895
    %vm898 = vcmp.eq.f32.partialorder %v788, 0.0
    %v899 = vand.u32 %v788, 2147483648
    %v900 = vsel %vm898, %v899, %v897
    %v901 = vsub.f32 0.0, %v795
    %v902 = vsub.f32 0.0, %v802
    %v903 = vsub.f32 0.0, %v809
    %v904 = vsub.f32 0.0, %v816
    %v905 = vsub.f32 0.0, %v823
    %v906 = vsub.f32 0.0, %v830
    %v907 = vsub.f32 0.0, %v837
    %v908 = vsub.f32 0.0, %v844
    %v909 = vsub.f32 0.0, %v851
    %v910 = vsub.f32 0.0, %v858
    %v911 = vsub.f32 0.0, %v865
    %v912 = vsub.f32 0.0, %v872
    %v913 = vsub.f32 0.0, %v879
    %v914 = vsub.f32 0.0, %v886
    %v915 = vsub.f32 0.0, %v893
    %v916 = vsub.f32 0.0, %v900
    %v917 = vmul.f32 %v901, 1.442695
    %v918 = vpow.pop %v917
    %v919 = vmul.f32 %v902, 1.442695
    %v920 = vpow.pop %v919
    %v921 = vmul.f32 %v903, 1.442695
    %v922 = vpow.pop %v921
    %v923 = vmul.f32 %v904, 1.442695
    %v924 = vpow.pop %v923
    %v925 = vmul.f32 %v905, 1.442695
    %v926 = vpow.pop %v925
    %v927 = vmul.f32 %v906, 1.442695
    %v928 = vpow.pop %v927
    %v929 = vmul.f32 %v907, 1.442695
    %v930 = vpow.pop %v929
    %v931 = vmul.f32 %v908, 1.442695
    %v932 = vpow.pop %v931
    %v933 = vmul.f32 %v909, 1.442695
    %v934 = vpow.pop %v933
    %v935 = vmul.f32 %v910, 1.442695
    %v936 = vpow.pop %v935
    %v937 = vmul.f32 %v911, 1.442695
    %v938 = vpow.pop %v937
    %v939 = vmul.f32 %v912, 1.442695
    %v940 = vpow.pop %v939
    %v941 = vmul.f32 %v913, 1.442695
    %v942 = vpow.pop %v941
    %v943 = vmul.f32 %v914, 1.442695
    %v944 = vpow.pop %v943
    %v945 = vmul.f32 %v915, 1.442695
    %v946 = vpow.pop %v945
    %v947 = vmul.f32 %v916, 1.442695
    %v948 = vpow.pop %v947
    %v949 = vsub.f32 1.0, %v918
    %v950 = vsub.f32 1.0, %v920
    %v951 = vsub.f32 1.0, %v922
    %v952 = vsub.f32 1.0, %v924
    %v953 = vsub.f32 1.0, %v926
    %v954 = vsub.f32 1.0, %v928
    %v955 = vsub.f32 1.0, %v930
    %v956 = vsub.f32 1.0, %v932
    %v957 = vsub.f32 1.0, %v934
    %v958 = vsub.f32 1.0, %v936
    %v959 = vsub.f32 1.0, %v938
    %v960 = vsub.f32 1.0, %v940
    %v961 = vsub.f32 1.0, %v942
    %v962 = vsub.f32 1.0, %v944
    %v963 = vsub.f32 1.0, %v946
    %v964 = vsub.f32 1.0, %v948
    %v965 = vmax.f32 %v949, 1e-38
    %v966 = vmax.f32 %v950, 1e-38
    %v967 = vmax.f32 %v951, 1e-38
    %v968 = vmax.f32 %v952, 1e-38
    %v969 = vmax.f32 %v953, 1e-38
    %v970 = vmax.f32 %v954, 1e-38
    %v971 = vmax.f32 %v955, 1e-38
    %v972 = vmax.f32 %v956, 1e-38
    %v973 = vmax.f32 %v957, 1e-38
    %v974 = vmax.f32 %v958, 1e-38
    %v975 = vmax.f32 %v959, 1e-38
    %v976 = vmax.f32 %v960, 1e-38
    %v977 = vmax.f32 %v961, 1e-38
    %v978 = vmax.f32 %v962, 1e-38
    %v979 = vmax.f32 %v963, 1e-38
    %v980 = vmax.f32 %v964, 1e-38
    %v981 = vmul.f32 %v795, 0.5
    %v982 = vmul.f32 %v802, 0.5
    %v983 = vmul.f32 %v809, 0.5
    %v984 = vmul.f32 %v816, 0.5
    %v985 = vmul.f32 %v823, 0.5
    %v986 = vmul.f32 %v830, 0.5
    %v987 = vmul.f32 %v837, 0.5
    %v988 = vmul.f32 %v844, 0.5
    %v989 = vmul.f32 %v851, 0.5
    %v990 = vmul.f32 %v858, 0.5
    %v991 = vmul.f32 %v865, 0.5
    %v992 = vmul.f32 %v872, 0.5
    %v993 = vmul.f32 %v879, 0.5
    %v994 = vmul.f32 %v886, 0.5
    %v995 = vmul.f32 %v893, 0.5
    %v996 = vmul.f32 %v900, 0.5
    %v997 = vsub.f32 1.0, %v981
    %v998 = vsub.f32 1.0, %v982
    %v999 = vsub.f32 1.0, %v983
    %v1000 = vsub.f32 1.0, %v984
    %v1001 = vsub.f32 1.0, %v985
    %v1002 = vsub.f32 1.0, %v986
    %v1003 = vsub.f32 1.0, %v987
    %v1004 = vsub.f32 1.0, %v988
    %v1005 = vsub.f32 1.0, %v989
    %v1006 = vsub.f32 1.0, %v990
    %v1007 = vsub.f32 1.0, %v991
    %v1008 = vsub.f32 1.0, %v992
    %v1009 = vsub.f32 1.0, %v993
    %v1010 = vsub.f32 1.0, %v994
    %v1011 = vsub.f32 1.0, %v995
    %v1012 = vsub.f32 1.0, %v996
    %v1013 = vmul.f32 %v795, %v795
    %v1014 = vmul.f32 %v802, %v802
    %v1015 = vmul.f32 %v809, %v809
    %v1016 = vmul.f32 %v816, %v816
    %v1017 = vmul.f32 %v823, %v823
    %v1018 = vmul.f32 %v830, %v830
    %v1019 = vmul.f32 %v837, %v837
    %v1020 = vmul.f32 %v844, %v844
    %v1021 = vmul.f32 %v851, %v851
    %v1022 = vmul.f32 %v858, %v858
    %v1023 = vmul.f32 %v865, %v865
    %v1024 = vmul.f32 %v872, %v872
    %v1025 = vmul.f32 %v879, %v879
    %v1026 = vmul.f32 %v886, %v886
    %v1027 = vmul.f32 %v893, %v893
    %v1028 = vmul.f32 %v900, %v900
    %v1029 = vmul.f32 %v1013, 0.16666667
    %v1030 = vmul.f32 %v1014, 0.16666667
    %v1031 = vmul.f32 %v1015, 0.16666667
    %v1032 = vmul.f32 %v1016, 0.16666667
    %v1033 = vmul.f32 %v1017, 0.16666667
    %v1034 = vmul.f32 %v1018, 0.16666667
    %v1035 = vmul.f32 %v1019, 0.16666667
    %v1036 = vmul.f32 %v1020, 0.16666667
    %v1037 = vmul.f32 %v1021, 0.16666667
    %v1038 = vmul.f32 %v1022, 0.16666667
    %v1039 = vmul.f32 %v1023, 0.16666667
    %v1040 = vmul.f32 %v1024, 0.16666667
    %v1041 = vmul.f32 %v1025, 0.16666667
    %v1042 = vmul.f32 %v1026, 0.16666667
    %v1043 = vmul.f32 %v1027, 0.16666667
    %v1044 = vmul.f32 %v1028, 0.16666667
    %v1045 = vadd.f32 %v997, %v1029
    %v1046 = vadd.f32 %v998, %v1030
    %v1047 = vadd.f32 %v999, %v1031
    %v1048 = vadd.f32 %v1000, %v1032
    %v1049 = vadd.f32 %v1001, %v1033
    %v1050 = vadd.f32 %v1002, %v1034
    %v1051 = vadd.f32 %v1003, %v1035
    %v1052 = vadd.f32 %v1004, %v1036
    %v1053 = vadd.f32 %v1005, %v1037
    %v1054 = vadd.f32 %v1006, %v1038
    %v1055 = vadd.f32 %v1007, %v1039
    %v1056 = vadd.f32 %v1008, %v1040
    %v1057 = vadd.f32 %v1009, %v1041
    %v1058 = vadd.f32 %v1010, %v1042
    %v1059 = vadd.f32 %v1011, %v1043
    %v1060 = vadd.f32 %v1012, %v1044
    %v1061 = vmul.f32 %v795, %v1045
    %v1062 = vmul.f32 %v802, %v1046
    %v1063 = vmul.f32 %v809, %v1047
    %v1064 = vmul.f32 %v816, %v1048
    %v1065 = vmul.f32 %v823, %v1049
    %v1066 = vmul.f32 %v830, %v1050
    %v1067 = vmul.f32 %v837, %v1051
    %v1068 = vmul.f32 %v844, %v1052
    %v1069 = vmul.f32 %v851, %v1053
    %v1070 = vmul.f32 %v858, %v1054
    %v1071 = vmul.f32 %v865, %v1055
    %v1072 = vmul.f32 %v872, %v1056
    %v1073 = vmul.f32 %v879, %v1057
    %v1074 = vmul.f32 %v886, %v1058
    %v1075 = vmul.f32 %v893, %v1059
    %v1076 = vmul.f32 %v900, %v1060
    %vm1077 = vcmp.lt.f32.partialorder %v795, 0.01
    %vm1078 = vcmp.lt.f32.partialorder %v802, 0.01
    %vm1079 = vcmp.lt.f32.partialorder %v809, 0.01
    %vm1080 = vcmp.lt.f32.partialorder %v816, 0.01
    %vm1081 = vcmp.lt.f32.partialorder %v823, 0.01
    %vm1082 = vcmp.lt.f32.partialorder %v830, 0.01
    %vm1083 = vcmp.lt.f32.partialorder %v837, 0.01
    %vm1084 = vcmp.lt.f32.partialorder %v844, 0.01
    %vm1085 = vcmp.lt.f32.partialorder %v851, 0.01
    %vm1086 = vcmp.lt.f32.partialorder %v858, 0.01
    %vm1087 = vcmp.lt.f32.partialorder %v865, 0.01
    %vm1088 = vcmp.lt.f32.partialorder %v872, 0.01
    %vm1089 = vcmp.lt.f32.partialorder %v879, 0.01
    %vm1090 = vcmp.lt.f32.partialorder %v886, 0.01
    %vm1091 = vcmp.lt.f32.partialorder %v893, 0.01
    %vm1092 = vcmp.lt.f32.partialorder %v900, 0.01
    %v1093 = vsel %vm1077, %v1061, %v965
    %v1094 = vsel %vm1078, %v1062, %v966
    %v1095 = vsel %vm1079, %v1063, %v967
    %v1096 = vsel %vm1080, %v1064, %v968
    %v1097 = vsel %vm1081, %v1065, %v969
    %v1098 = vsel %vm1082, %v1066, %v970
    %v1099 = vsel %vm1083, %v1067, %v971
    %v1100 = vsel %vm1084, %v1068, %v972
    %v1101 = vsel %vm1085, %v1069, %v973
    %v1102 = vsel %vm1086, %v1070, %v974
    %v1103 = vsel %vm1087, %v1071, %v975
    %v1104 = vsel %vm1088, %v1072, %v976
    %v1105 = vsel %vm1089, %v1073, %v977
    %v1106 = vsel %vm1090, %v1074, %v978
    %v1107 = vsel %vm1091, %v1075, %v979
    %v1108 = vsel %vm1092, %v1076, %v980
    %v1109 = vlog2.pop %v1093
    %v1110 = vmul.f32 %v1109, 0.6931472
    %v1111 = vlog2.pop %v1094
    %v1112 = vmul.f32 %v1111, 0.6931472
    %v1113 = vlog2.pop %v1095
    %v1114 = vmul.f32 %v1113, 0.6931472
    %v1115 = vlog2.pop %v1096
    %v1116 = vmul.f32 %v1115, 0.6931472
    %v1117 = vlog2.pop %v1097
    %v1118 = vmul.f32 %v1117, 0.6931472
    %v1119 = vlog2.pop %v1098
    %v1120 = vmul.f32 %v1119, 0.6931472
    %v1121 = vlog2.pop %v1099
    %v1122 = vmul.f32 %v1121, 0.6931472
    %v1123 = vlog2.pop %v1100
    %v1124 = vmul.f32 %v1123, 0.6931472
    %v1125 = vlog2.pop %v1101
    %v1126 = vmul.f32 %v1125, 0.6931472
    %v1127 = vlog2.pop %v1102
    %v1128 = vmul.f32 %v1127, 0.6931472
    %v1129 = vlog2.pop %v1103
    %v1130 = vmul.f32 %v1129, 0.6931472
    %v1131 = vlog2.pop %v1104
    %v1132 = vmul.f32 %v1131, 0.6931472
    %v1133 = vlog2.pop %v1105
    %v1134 = vmul.f32 %v1133, 0.6931472
    %v1135 = vlog2.pop %v1106
    %v1136 = vmul.f32 %v1135, 0.6931472
    %v1137 = vlog2.pop %v1107
    %v1138 = vmul.f32 %v1137, 0.6931472
    %v1139 = vlog2.pop %v1108
    %v1140 = vmul.f32 %v1139, 0.6931472
    %vm1157 = vcmask 1041409
    %v1158 = vsel %vm1157, %v902, %v901
    %vm1159 = vcmask 1042434
    %v1160 = vsel %vm1159, %v903, %v1158
    %vm1161 = vcmask 1043459
    %v1162 = vsel %vm1161, %v904, %v1160
    %vm1163 = vcmask 1044484
    %v1164 = vsel %vm1163, %v905, %v1162
    %vm1165 = vcmask 1045509
    %v1166 = vsel %vm1165, %v906, %v1164
    %vm1167 = vcmask 1046534
    %v1168 = vsel %vm1167, %v907, %v1166
    %vm1169 = vcmask 1047559
    %v1170 = vsel %vm1169, %v908, %v1168
    %v1171 = vsel %vm1157, %v910, %v909
    %v1172 = vsel %vm1159, %v911, %v1171
    %v1173 = vsel %vm1161, %v912, %v1172
    %v1174 = vsel %vm1163, %v913, %v1173
    %v1175 = vsel %vm1165, %v914, %v1174
    %v1176 = vsel %vm1167, %v915, %v1175
    %v1177 = vsel %vm1169, %v916, %v1176
    %v1196 = vsel %vm1157, %v1112, %v1110
    %v1197 = vsel %vm1159, %v1114, %v1196
    %v1198 = vsel %vm1161, %v1116, %v1197
    %v1199 = vsel %vm1163, %v1118, %v1198
    %v1200 = vsel %vm1165, %v1120, %v1199
    %v1201 = vsel %vm1167, %v1122, %v1200
    %v1202 = vsel %vm1169, %v1124, %v1201
    %v1203 = vsel %vm1157, %v1128, %v1126
    %v1204 = vsel %vm1159, %v1130, %v1203
    %v1205 = vsel %vm1161, %v1132, %v1204
    %v1206 = vsel %vm1163, %v1134, %v1205
    %v1207 = vsel %vm1165, %v1136, %v1206
    %v1208 = vsel %vm1167, %v1138, %v1207
    %v1209 = vsel %vm1169, %v1140, %v1208
    %v1212 = vld [vmem:[%s4] sm:$0xff]
    %v1213 = vld [vmem:[%s4 + $0x8] sm:$0xff]
    %v1214 = vld [vmem:[%s4 + $0x10] sm:$0xff]
    %v1215 = vld [vmem:[%s4 + $0x18] sm:$0xff]
    %v1216 = vld [vmem:[%s4 + $0x20] sm:$0xff]
    %v1217 = vld [vmem:[%s4 + $0x28] sm:$0xff]
    %v1218 = vld [vmem:[%s4 + $0x30] sm:$0xff]
    %v1219 = vld [vmem:[%s4 + $0x38] sm:$0xff]
    %v1220 = vld [vmem:[%s4 + $0x40] sm:$0xff]
    %v1221 = vld [vmem:[%s4 + $0x48] sm:$0xff]
    %v1222 = vld [vmem:[%s4 + $0x50] sm:$0xff]
    %v1223 = vld [vmem:[%s4 + $0x58] sm:$0xff]
    %v1224 = vld [vmem:[%s4 + $0x60] sm:$0xff]
    %v1225 = vld [vmem:[%s4 + $0x68] sm:$0xff]
    %v1226 = vld [vmem:[%s4 + $0x70] sm:$0xff]
    %v1227 = vld [vmem:[%s4 + $0x78] sm:$0xff]
    %v1228 = vld [vmem:[%s4 + $0x80] sm:$0xff]
    %v1229 = vld [vmem:[%s4 + $0x88] sm:$0xff]
    %v1230 = vld [vmem:[%s4 + $0x90] sm:$0xff]
    %v1231 = vld [vmem:[%s4 + $0x98] sm:$0xff]
    %v1232 = vld [vmem:[%s4 + $0xa0] sm:$0xff]
    %v1233 = vld [vmem:[%s4 + $0xa8] sm:$0xff]
    %v1234 = vld [vmem:[%s4 + $0xb0] sm:$0xff]
    %v1235 = vld [vmem:[%s4 + $0xb8] sm:$0xff]
    %v1236 = vld [vmem:[%s4 + $0xc0] sm:$0xff]
    %v1237 = vld [vmem:[%s4 + $0xc8] sm:$0xff]
    %v1238 = vld [vmem:[%s4 + $0xd0] sm:$0xff]
    %v1239 = vld [vmem:[%s4 + $0xd8] sm:$0xff]
    %v1240 = vld [vmem:[%s4 + $0xe0] sm:$0xff]
    %v1241 = vld [vmem:[%s4 + $0xe8] sm:$0xff]
    %v1242 = vld [vmem:[%s4 + $0xf0] sm:$0xff]
    %v1243 = vld [vmem:[%s4 + $0xf8] sm:$0xff]
    %1244 = vmatprep.subr.mxu0 0.0
    %1245 = vmatpush1.msra.mxu0 %v1212
    %1246 = vmatprep.subr.mxu0 0.0
    %1247 = vmatpush1.msra.mxu0 %v1213
    %1248 = vmatprep.subr.mxu0 0.0
    %1249 = vmatpush1.msra.mxu0 %v1214
    %1250 = vmatprep.subr.mxu0 0.0
    %1251 = vmatpush1.msra.mxu0 %v1215
    %1252 = vmatprep.subr.mxu0 0.0
    %1253 = vmatpush1.msra.mxu0 %v1216
    %1254 = vmatprep.subr.mxu0 0.0
    %1255 = vmatpush1.msra.mxu0 %v1217
    %1256 = vmatprep.subr.mxu0 0.0
    %1257 = vmatpush1.msra.mxu0 %v1218
    %1258 = vmatprep.subr.mxu0 0.0
    %1259 = vmatpush1.msra.mxu0 %v1219
    %1260 = vmatprep.subr.mxu0 0.0
    %1261 = vmatpush1.msra.mxu0 %v1220
    %1262 = vmatprep.subr.mxu0 0.0
    %1263 = vmatpush1.msra.mxu0 %v1221
    %1264 = vmatprep.subr.mxu0 0.0
    %1265 = vmatpush1.msra.mxu0 %v1222
    %1266 = vmatprep.subr.mxu0 0.0
    %1267 = vmatpush1.msra.mxu0 %v1223
    %1268 = vmatprep.subr.mxu0 0.0
    %1269 = vmatpush1.msra.mxu0 %v1224
    %1270 = vmatprep.subr.mxu0 0.0
    %1271 = vmatpush1.msra.mxu0 %v1225
    %1272 = vmatprep.subr.mxu0 0.0
    %1273 = vmatpush1.msra.mxu0 %v1226
    %1274 = vmatprep.subr.mxu0 0.0
    %1275 = vmatpush1.msra.mxu0 %v1227
    %1276 = vmatprep.subr.mxu0 0.0
    %1277 = vmatpush1.msra.mxu0 %v1228
    %1278 = vmatprep.subr.mxu0 0.0
    %1279 = vmatpush1.msra.mxu0 %v1229
    %1280 = vmatprep.subr.mxu0 0.0
    %1281 = vmatpush1.msra.mxu0 %v1230
    %1282 = vmatprep.subr.mxu0 0.0
    %1283 = vmatpush1.msra.mxu0 %v1231
    %1284 = vmatprep.subr.mxu0 0.0
    %1285 = vmatpush1.msra.mxu0 %v1232
    %1286 = vmatprep.subr.mxu0 0.0
    %1287 = vmatpush1.msra.mxu0 %v1233
    %1288 = vmatprep.subr.mxu0 0.0
    %1289 = vmatpush1.msra.mxu0 %v1234
    %1290 = vmatprep.subr.mxu0 0.0
    %1291 = vmatpush1.msra.mxu0 %v1235
    %1292 = vmatprep.subr.mxu0 0.0
    %1293 = vmatpush1.msra.mxu0 %v1236
    %1294 = vmatprep.subr.mxu0 0.0
    %1295 = vmatpush1.msra.mxu0 %v1237
    %1296 = vmatprep.subr.mxu0 0.0
    %1297 = vmatpush1.msra.mxu0 %v1238
    %1298 = vmatprep.subr.mxu0 0.0
    %1299 = vmatpush1.msra.mxu0 %v1239
    %1300 = vmatprep.subr.mxu0 0.0
    %1301 = vmatpush1.msra.mxu0 %v1240
    %1302 = vmatprep.subr.mxu0 0.0
    %1303 = vmatpush1.msra.mxu0 %v1241
    %1304 = vmatprep.subr.mxu0 0.0
    %1305 = vmatpush1.msra.mxu0 %v1242
    %1306 = vmatprep.subr.mxu0 0.0
    %1307 = vmatpush1.msra.mxu0 %v1243
    %1308 = vmatprep.mubr.f32.mxu0 %v1202
    %1309 = vmatmul.mubr.f32.gmra.mrb[0].mxu0 %v1170
    %v1310 = vpop.f32.mrb[0].mxu0
    %v1311 = vadd.f32 0.0, %v1310
    %v1312 = vpop.f32.mrb[0].mxu0
    %1313 = vmatprep.mubr.f32.mxu0 %v1209
    %1314 = vmatmul.mubr.f32.gmra.mrb[0].mxu0 %v1177
    %v1315 = vpop.f32.mrb[0].mxu0
    %v1316 = vadd.f32 0.0, %v1315
    %v1317 = vpop.f32.mrb[0].mxu0
    %1318 = vdwg.mxu0
    %v1319 = vmul.f32 %v1311, 1.442695
    %v1320 = vpow.pop %v1319
    %v1321 = vmul.f32 %v1316, 1.442695
    %v1322 = vpow.pop %v1321
    %v1323 = vld [vmem:[%s5] sm:$0xff]
    %v1324 = vld [vmem:[%s5 + $0x8] sm:$0xff]
    %v1325 = vld [vmem:[%s5 + $0x10] sm:$0xff]
    %v1326 = vld [vmem:[%s5 + $0x18] sm:$0xff]
    %v1327 = vld [vmem:[%s5 + $0x20] sm:$0xff]
    %v1328 = vld [vmem:[%s5 + $0x28] sm:$0xff]
    %v1329 = vld [vmem:[%s5 + $0x30] sm:$0xff]
    %v1330 = vld [vmem:[%s5 + $0x38] sm:$0xff]
    %v1331 = vld [vmem:[%s5 + $0x40] sm:$0xff]
    %v1332 = vld [vmem:[%s5 + $0x48] sm:$0xff]
    %v1333 = vld [vmem:[%s5 + $0x50] sm:$0xff]
    %v1334 = vld [vmem:[%s5 + $0x58] sm:$0xff]
    %v1335 = vld [vmem:[%s5 + $0x60] sm:$0xff]
    %v1336 = vld [vmem:[%s5 + $0x68] sm:$0xff]
    %v1337 = vld [vmem:[%s5 + $0x70] sm:$0xff]
    %v1338 = vld [vmem:[%s5 + $0x78] sm:$0xff]
    %1339 = vmatprep.subr.mxu0 0.0
    %1340 = vmatpush1.msra.mxu0 %v1323
    %1341 = vmatprep.subr.mxu0 0.0
    %1342 = vmatpush1.msra.mxu0 %v1324
    %1343 = vmatprep.subr.mxu0 0.0
    %1344 = vmatpush1.msra.mxu0 %v1325
    %1345 = vmatprep.subr.mxu0 0.0
    %1346 = vmatpush1.msra.mxu0 %v1326
    %1347 = vmatprep.subr.mxu0 0.0
    %1348 = vmatpush1.msra.mxu0 %v1327
    %1349 = vmatprep.subr.mxu0 0.0
    %1350 = vmatpush1.msra.mxu0 %v1328
    %1351 = vmatprep.subr.mxu0 0.0
    %1352 = vmatpush1.msra.mxu0 %v1329
    %1353 = vmatprep.subr.mxu0 0.0
    %1354 = vmatpush1.msra.mxu0 %v1330
    %1355 = vmatprep.subr.mxu0 0.0
    %1356 = vmatpush1.msra.mxu0 %v1331
    %1357 = vmatprep.subr.mxu0 0.0
    %1358 = vmatpush1.msra.mxu0 %v1332
    %1359 = vmatprep.subr.mxu0 0.0
    %1360 = vmatpush1.msra.mxu0 %v1333
    %1361 = vmatprep.subr.mxu0 0.0
    %1362 = vmatpush1.msra.mxu0 %v1334
    %1363 = vmatprep.subr.mxu0 0.0
    %1364 = vmatpush1.msra.mxu0 %v1335
    %1365 = vmatprep.subr.mxu0 0.0
    %1366 = vmatpush1.msra.mxu0 %v1336
    %1367 = vmatprep.subr.mxu0 0.0
    %1368 = vmatpush1.msra.mxu0 %v1337
    %1369 = vmatprep.subr.mxu0 0.0
    %1370 = vmatpush1.msra.mxu0 %v1338
    %1371 = vmatprep.subr.mxu0 0.0
    %1372 = vmatpush1.msra.mxu0 0.0
    %1373 = vmatprep.subr.mxu0 0.0
    %1374 = vmatpush1.msra.mxu0 0.0
    %1375 = vmatprep.subr.mxu0 0.0
    %1376 = vmatpush1.msra.mxu0 0.0
    %1377 = vmatprep.subr.mxu0 0.0
    %1378 = vmatpush1.msra.mxu0 0.0
    %1379 = vmatprep.subr.mxu0 0.0
    %1380 = vmatpush1.msra.mxu0 0.0
    %1381 = vmatprep.subr.mxu0 0.0
    %1382 = vmatpush1.msra.mxu0 0.0
    %1383 = vmatprep.subr.mxu0 0.0
    %1384 = vmatpush1.msra.mxu0 0.0
    %1385 = vmatprep.subr.mxu0 0.0
    %1386 = vmatpush1.msra.mxu0 0.0
    %1387 = vmatprep.subr.mxu0 0.0
    %1388 = vmatpush1.msra.mxu0 0.0
    %1389 = vmatprep.subr.mxu0 0.0
    %1390 = vmatpush1.msra.mxu0 0.0
    %1391 = vmatprep.subr.mxu0 0.0
    %1392 = vmatpush1.msra.mxu0 0.0
    %1393 = vmatprep.subr.mxu0 0.0
    %1394 = vmatpush1.msra.mxu0 0.0
    %1395 = vmatprep.subr.mxu0 0.0
    %1396 = vmatpush1.msra.mxu0 0.0
    %1397 = vmatprep.subr.mxu0 0.0
    %1398 = vmatpush1.msra.mxu0 0.0
    %1399 = vmatprep.subr.mxu0 0.0
    %1400 = vmatpush1.msra.mxu0 0.0
    %1401 = vmatprep.subr.mxu0 0.0
    %1402 = vmatpush1.msra.mxu0 0.0
    %1403 = vmatprep.mubr.f32.mxu0 0.0
    %1404 = vmatmul.mubr.f32.gmra.mrb[0].mxu0 %v1320
    %v1405 = vpop.f32.mrb[0].mxu0
    %v1406 = vadd.f32 0.0, %v1405
    %v1407 = vpop.f32.mrb[0].mxu0
    %1408 = vmatprep.mubr.f32.mxu0 0.0
    %1409 = vmatmul.mubr.f32.gmra.mrb[0].mxu0 %v1322
    %v1410 = vpop.f32.mrb[0].mxu0
    %v1411 = vadd.f32 0.0, %v1410
    %v1412 = vpop.f32.mrb[0].mxu0
    %1413 = vdwg.mxu0
    %1414 = vst [vmem:[#allocation2] sm:$0xff] %v1406
    %1415 = vst [vmem:[#allocation2 + $0x8] sm:$0xff] %v1411
    %v1432 = vsel %vm1157, %v920, %v918
    %v1433 = vsel %vm1159, %v922, %v1432
    %v1434 = vsel %vm1161, %v924, %v1433
    %v1435 = vsel %vm1163, %v926, %v1434
    %v1436 = vsel %vm1165, %v928, %v1435
    %v1437 = vsel %vm1167, %v930, %v1436
    %v1438 = vsel %vm1169, %v932, %v1437
    %v1439 = vsel %vm1157, %v936, %v934
    %v1440 = vsel %vm1159, %v938, %v1439
    %v1441 = vsel %vm1161, %v940, %v1440
    %v1442 = vsel %vm1163, %v942, %v1441
    %v1443 = vsel %vm1165, %v944, %v1442
    %v1444 = vsel %vm1167, %v946, %v1443
    %v1445 = vsel %vm1169, %v948, %v1444
    %1448 = vst [vmem:[#allocation4] sm:$0xff] %v1438
    %1449 = vst [vmem:[#allocation4 + $0x8] sm:$0xff] %v1445
    // Predicated region
    $region26: #{tpu_custom_call.1} parent=1 // pred_check
      _
    $region27: #{tpu_custom_call.1} parent=1 // pred_check_branch
      %1451 = sbr.rel (0) target = $region29
    $region28: #{tpu_custom_call.1} parent=1 // pred_region
      %s1453 = ssub.s32 256, 256
      %1454 = vsyncadd [#allocation3], %s1453
      %s1455 = sshll.u32 [#allocation2], 4
      %s1456 = int_to_ptr.vmem [resolvable:$true] %s1455
      %1461 = dma.vmem_to_hbm [thread:$0]  %s1456, 256, %s6, [#allocation3], 128, 128, 8
    $region29: #{tpu_custom_call.1} parent=1 // pred_fallthru
      _
    // Predicated region
    $region30: #{tpu_custom_call.1} parent=1 // pred_check
      _
    $region31: #{tpu_custom_call.1} parent=1 // pred_check_branch
      %1463 = sbr.rel (0) target = $region33
    $region32: #{tpu_custom_call.1} parent=1 // pred_region
      %s1465 = ssub.s32 256, 256
      %1466 = vsyncadd [#allocation5], %s1465
      %s1467 = sshll.u32 [#allocation4], 4
      %s1468 = int_to_ptr.vmem [resolvable:$true] %s1467
      %1473 = dma.vmem_to_hbm [thread:$0]  %s1468, 256, %s7, [#allocation5], 128, 128, 8
    $region33: #{tpu_custom_call.1} parent=1 // pred_fallthru
      _
    // Predicated region
    $region34: #{tpu_custom_call.1} parent=1 // pred_check
      _
    $region35: #{tpu_custom_call.1} parent=1 // pred_check_branch
      %1475 = sbr.rel (0) target = $region37
    $region36: #{tpu_custom_call.1} parent=1 // pred_region
      %1476 = dma.done [#allocation3], 256
    $region37: #{tpu_custom_call.1} parent=1 // pred_fallthru
      _
    // Predicated region
    $region38: #{tpu_custom_call.1} parent=1 // pred_check
      _
    $region39: #{tpu_custom_call.1} parent=1 // pred_check_branch
      %1478 = sbr.rel (0) target = $region41
    $region40: #{tpu_custom_call.1} parent=1 // pred_region
      %1479 = dma.done [#allocation5], 256
    $region41: #{tpu_custom_call.1} parent=1 // pred_fallthru
      _
    %1480 = vsyncpa [#allocation3], 1
    %1481 = vsyncpa [#allocation5], 1

</llo_original>
